<compile_context>
chip_gen: v7x
topology: tpu7x:2x2x1
jax: 0.10.0
libtpu: 0.0.40
codegen_flags: <defaults>
</compile_context>

<pallas_src>
import functools
import numpy as np
import jax
import jax.numpy as jnp
from jax.experimental import pallas as pl
from jax.experimental.pallas import tpu as pltpu

BN_EPS = 1e-5
EXPANSION = 4


# --------------------------------- kernel ---------------------------------- #
def _bottleneck_kernel(x_ref, w1_ref, b1_ref, w2_ref, b2_ref, wz_ref, bz_ref,
                       o_ref, *, H, W, has_projection):
    """Fused bottleneck block for one image (dense rows, no spatial padding).

    x_ref : (H*W, Cin)            bf16  input rows (row-major over (h, w))
    w1    : (Cin, width)          bf16  conv1 with BN1 folded;  b1: (1, width) f32
    w2    : (3, 3*width, width)   bf16  conv2 taps grouped per kh (K packed over kw, cin)
    wz    : (width[+Cin], Cout)   bf16  conv3 (+ projection shortcut stacked along K)
    bz    : (1, Cout)             f32   folded BN3 (+ BNs) bias
    o_ref : (H*W, Cout)           f32   dense output rows
    """
    Mout = H * W
    width = w1_ref.shape[1]
    K2 = 3 * width

    # ---- conv1 (1x1) + BN1 + ReLU ---------------------------------------- #
    x = x_ref[...]                                               # (Mout, Cin) bf16
    y1 = jnp.dot(x, w1_ref[...], preferred_element_type=jnp.float32)
    y1 = jnp.maximum(y1 + b1_ref[...], 0.0)                      # (Mout, width) f32

    # ---- pack the three kw taps along K (single bf16 cast) ---------------- #
    # packed[i, kw*width + c] = y1(h_i, w_i + kw - 1, c), with the horizontal
    # wrap-around entries zeroed — this IS the 3x3 conv's zero padding in W.
    col = jax.lax.broadcasted_iota(jnp.int32, (Mout, 1), 0) % W
    zrow = jnp.zeros((1, width), jnp.float32)
    left = jnp.where(col == 0, 0.0,
                     jnp.concatenate([zrow, y1[:Mout - 1]], axis=0))
    right = jnp.where(col == W - 1, 0.0,
                      jnp.concatenate([y1[1:], zrow], axis=0))
    packed = jnp.concatenate([left, y1, right], axis=1).astype(jnp.bfloat16)

    # ---- conv2 (3x3, pad=1) as 3 matmuls with K = 3*width ----------------- #
    # Vertical zero padding = the W-row zero block; shifts are whole-tile
    # (multiples of W = 16 rows) so no unaligned packed-sublane accesses.
    zblk = jnp.zeros((W, K2), jnp.bfloat16)
    slabs = (jnp.concatenate([zblk, packed[:Mout - W]], axis=0),   # kh = 0
             packed,                                               # kh = 1
             jnp.concatenate([packed[W:], zblk], axis=0))          # kh = 2
    acc = jnp.zeros((Mout, width), jnp.float32)
    for kh in range(3):
        acc = acc + jnp.dot(slabs[kh], w2_ref[kh],
                            preferred_element_type=jnp.float32)
    y2 = jnp.maximum(acc + b2_ref[...], 0.0).astype(jnp.bfloat16)

    # ---- conv3 (1x1) + BN3, fused with the shortcut, residual + ReLU ------ #
    if has_projection:
        zin = jnp.concatenate([y2, x], axis=1)                    # (Mout, width+Cin)
        z = jnp.dot(zin, wz_ref[...], preferred_element_type=jnp.float32)
        o_ref[...] = jnp.maximum(z + bz_ref[...], 0.0)
    else:
        z = jnp.dot(y2, wz_ref[...], preferred_element_type=jnp.float32)
        o_ref[...] = jnp.maximum(z + bz_ref[...] + x.astype(jnp.float32), 0.0)


# --------------------------------- wrapper --------------------------------- #
def _fold_bn(w, bn):
    """Fold inference-mode BatchNorm into the preceding conv (fold in f32, cast once)."""
    scale = bn['gamma'] / jnp.sqrt(bn['var'] + BN_EPS)
    bias = bn['beta'] - bn['mean'] * scale
    return (w * scale).astype(jnp.bfloat16), bias.reshape(1, -1).astype(jnp.float32)


def bottleneck_forward(params, x_nchw, *, stride=1):
    N, Cin, H, W = x_nchw.shape
    Mout = H * W

    w1, b1 = _fold_bn(params['w1'], params['bn1'])
    w2, b2 = _fold_bn(params['w2'], params['bn2'])
    width = w1.shape[1]
    w2 = w2.reshape(3, 3 * width, width)            # group taps by kh: rows = (kw, cin)
    w3, b3 = _fold_bn(params['w3'], params['bn3'])
    Cout = w3.shape[1]
    has_proj = 'ws' in params
    if has_proj:
        ws, bs = _fold_bn(params['ws'], params['bns'])
        wz = jnp.concatenate([w3, ws], axis=0)      # conv3 + shortcut share one GEMM
        bz = b3 + bs
    else:
        wz, bz = w3, b3

    # NCHW -> (N, H*W, Cin) bf16: no spatial padding, no mask (handled in-kernel).
    x = jnp.transpose(x_nchw, (0, 2, 3, 1)).astype(jnp.bfloat16).reshape(N, Mout, Cin)

    def resident(shape):
        return pl.BlockSpec(shape, lambda n, _r=len(shape): (0,) * _r)

    out_flat = pl.pallas_call(
        functools.partial(_bottleneck_kernel, H=H, W=W, has_projection=has_proj),
        out_shape=jax.ShapeDtypeStruct((N, Mout, Cout), jnp.float32),
        grid=(N,),
        in_specs=[
            pl.BlockSpec((None, Mout, Cin), lambda n: (n, 0, 0)),   # per-image input
            resident(w1.shape), resident(b1.shape),                 # conv1 / bn1
            resident(w2.shape), resident(b2.shape),                 # conv2 / bn2
            resident(wz.shape), resident(bz.shape),                 # conv3 (+shortcut)
        ],
        out_specs=pl.BlockSpec((None, Mout, Cout), lambda n: (n, 0, 0)),
        compiler_params=pltpu.CompilerParams(
            dimension_semantics=("parallel",)),
    )(x, w1, b1, w2, b2, wz, bz)

    out = out_flat.reshape(N, H, W, Cout)
    if stride != 1:
        out = out[:, ::stride, ::stride, :]
    return jnp.transpose(out, (0, 3, 1, 2))          # back to NCHW


# ------------------------------- parameters -------------------------------- #
def init_params(key, in_channels, out_channels, stride=1, base_width=64):
    width = int(out_channels * (base_width / 64.0))
    cout = out_channels * EXPANSION
    k1, k2, k3, k4 = jax.random.split(key, 4)

    def conv_w(k, shape, fan_in):
        return jax.random.normal(k, shape, jnp.float32) / np.sqrt(fan_in)

    def bn_params(c):
        return dict(gamma=jnp.ones((c,), jnp.float32),
                    beta=jnp.zeros((c,), jnp.float32),
                    mean=jnp.zeros((c,), jnp.float32),
                    var=jnp.ones((c,), jnp.float32))

    params = {
        'w1': conv_w(k1, (in_channels, width), in_channels),        # 1x1
        'bn1': bn_params(width),
        'w2': conv_w(k2, (3, 3, width, width), 9 * width),          # 3x3 (HWIO)
        'bn2': bn_params(width),
        'w3': conv_w(k3, (width, cout), width),                     # 1x1
        'bn3': bn_params(cout),
    }
    if stride != 1 or in_channels != cout:
        params['ws'] = conv_w(k4, (in_channels, cout), in_channels)
        params['bns'] = bn_params(cout)
    return params


# --------------------------- pure-JAX reference ---------------------------- #
def reference_forward(params, x_nchw, *, stride=1):
    x = jnp.transpose(x_nchw, (0, 2, 3, 1))
    dn = ('NHWC', 'HWIO', 'NHWC')

    def bn_apply(y, bn):
        scale = bn['gamma'] / jnp.sqrt(bn['var'] + BN_EPS)
        return y * scale + (bn['beta'] - bn['mean'] * scale)

    y = jax.lax.conv_general_dilated(x, params['w1'][None, None], (1, 1), 'VALID',
                                     dimension_numbers=dn)
    y = jax.nn.relu(bn_apply(y, params['bn1']))
    y = jax.lax.conv_general_dilated(y, params['w2'], (stride, stride),
                                     ((1, 1), (1, 1)), dimension_numbers=dn)
    y = jax.nn.relu(bn_apply(y, params['bn2']))
    y = jax.lax.conv_general_dilated(y, params['w3'][None, None], (1, 1), 'VALID',
                                     dimension_numbers=dn)
    y = bn_apply(y, params['bn3'])
    if 'ws' in params:
        s = jax.lax.conv_general_dilated(x, params['ws'][None, None],
                                         (stride, stride), 'VALID',
                                         dimension_numbers=dn)
        s = bn_apply(s, params['bns'])
    else:
        s = x[:, ::stride, ::stride, :]
    return jnp.transpose(jax.nn.relu(y + s), (0, 3, 1, 2))


# ----------------------------------- main ----------------------------------- #
if __name__ == "__main__":
    key = jax.random.PRNGKey(0)
    pkey, xkey = jax.random.split(key)

    # in_channels != out_channels*4 -> the projection-shortcut path is exercised.
    in_channels, out_channels, stride = 64, 64, 1
    N, H, W = 2, 16, 16

    params = init_params(pkey, in_channels, out_channels, stride)
    x = jax.random.normal(xkey, (N, in_channels, H, W), jnp.float32)

    fwd = jax.jit(functools.partial(bottleneck_forward, stride=stride))
    out = jax.block_until_ready(fwd(params, x))

    assert out.shape == (N, out_channels * EXPANSION, H, W)
    assert out.dtype == jnp.float32

    # Loose tolerance: kernel matmuls run in bf16 with f32 accumulation.
    ref = reference_forward(params, x, stride=stride)
    err = float(jnp.max(jnp.abs(out - ref)))
    assert err < 0.1, f"mismatch vs reference: max abs err {err}"

    print("KERNEL_OK")
</pallas_src>

<mosaic_0001>
module attributes {stable_mosaic.version = 11 : i64} {
  func.func @_bottleneck_kernel(%arg0: i32, %arg1: memref<1x256x64xbf16, #tpu.memory_space<vmem>>, %arg2: memref<64x64xbf16, #tpu.memory_space<vmem>>, %arg3: memref<1x64xf32, #tpu.memory_space<vmem>>, %arg4: memref<3x192x64xbf16, #tpu.memory_space<vmem>>, %arg5: memref<1x64xf32, #tpu.memory_space<vmem>>, %arg6: memref<128x256xbf16, #tpu.memory_space<vmem>>, %arg7: memref<1x256xf32, #tpu.memory_space<vmem>>, %arg8: memref<1x256x256xf32, #tpu.memory_space<vmem>>) attributes {dimension_semantics = [#tpu.dimension_semantics<parallel>], iteration_bounds = array<i64: 2>, scalar_prefetch = 0 : i64, scratch_operands = 0 : i64, tpu.core_type = #tpu.core_type<tc>, window_params = [{transform_indices = @transform_0, window_bounds = array<i64: 1, 256, 64>}, {pipeline_mode = #tpu.pipeline_mode<synchronous>, transform_indices = @transform_1, window_bounds = array<i64: 64, 64>}, {pipeline_mode = #tpu.pipeline_mode<synchronous>, transform_indices = @transform_2, window_bounds = array<i64: 1, 64>}, {pipeline_mode = #tpu.pipeline_mode<synchronous>, transform_indices = @transform_3, window_bounds = array<i64: 3, 192, 64>}, {pipeline_mode = #tpu.pipeline_mode<synchronous>, transform_indices = @transform_4, window_bounds = array<i64: 1, 64>}, {pipeline_mode = #tpu.pipeline_mode<synchronous>, transform_indices = @transform_5, window_bounds = array<i64: 128, 256>}, {pipeline_mode = #tpu.pipeline_mode<synchronous>, transform_indices = @transform_6, window_bounds = array<i64: 1, 256>}, {transform_indices = @transform_7, window_bounds = array<i64: 1, 256, 256>}]} {
    %c0 = arith.constant 0 : index
    %c0_0 = arith.constant 0 : index
    %c0_1 = arith.constant 0 : index
    %0 = vector.load %arg1[%c0, %c0_0, %c0_1] : memref<1x256x64xbf16, #tpu.memory_space<vmem>>, vector<1x256x64xbf16>
    %1 = vector.shape_cast %0 : vector<1x256x64xbf16> to vector<256x64xbf16>
    %c0_2 = arith.constant 0 : index
    %c0_3 = arith.constant 0 : index
    %2 = vector.load %arg2[%c0_2, %c0_3] : memref<64x64xbf16, #tpu.memory_space<vmem>>, vector<64x64xbf16>
    %cst = arith.constant dense<0.000000e+00> : vector<256x64xf32>
    %3 = tpu.matmul %1, %2, %cst {dimension_numbers = #tpu.dot_dimension_numbers<[1], [0], [0], [1], [0, 0, 1, 1], [], []>} : vector<256x64xbf16>, vector<64x64xbf16>, vector<256x64xf32> -> vector<256x64xf32>
    %c0_4 = arith.constant 0 : index
    %c0_5 = arith.constant 0 : index
    %4 = vector.load %arg3[%c0_4, %c0_5] : memref<1x64xf32, #tpu.memory_space<vmem>>, vector<1x64xf32>
    %5 = vector.broadcast %4 : vector<1x64xf32> to vector<256x64xf32>
    %6 = arith.addf %3, %5 : vector<256x64xf32>
    %cst_6 = arith.constant 0.000000e+00 : f32
    %7 = vector.broadcast %cst_6 : f32 to vector<256x64xf32>
    %8 = arith.maximumf %6, %7 : vector<256x64xf32>
    %9 = tpu.iota {dimensions = array<i32: 0>} : vector<256x1xi32>
    %c16_i32 = arith.constant 16 : i32
    %c0_i32 = arith.constant 0 : i32
    %10 = arith.cmpi eq, %c16_i32, %c0_i32 : i32
    %c1_i32 = arith.constant 1 : i32
    %11 = arith.select %10, %c1_i32, %c16_i32 : i32
    %12 = vector.broadcast %11 : i32 to vector<256x1xi32>
    %13 = arith.remsi %9, %12 : vector<256x1xi32>
    %c0_i32_7 = arith.constant 0 : i32
    %14 = vector.broadcast %c0_i32_7 : i32 to vector<256x1xi32>
    %15 = arith.cmpi ne, %13, %14 : vector<256x1xi32>
    %c0_i32_8 = arith.constant 0 : i32
    %16 = vector.broadcast %c0_i32_8 : i32 to vector<256x1xi32>
    %17 = arith.cmpi slt, %13, %16 : vector<256x1xi32>
    %c0_i32_9 = arith.constant 0 : i32
    %18 = arith.cmpi slt, %11, %c0_i32_9 : i32
    %19 = vector.broadcast %18 : i1 to vector<256x1xi1>
    %20 = vector.broadcast %19 : vector<256x1xi1> to vector<256x1xi1>
    %21 = arith.xori %17, %20 : vector<256x1xi1>
    %22 = arith.andi %21, %15 : vector<256x1xi1>
    %23 = vector.broadcast %11 : i32 to vector<256x1xi32>
    %24 = arith.addi %13, %23 : vector<256x1xi32>
    %25 = arith.select %22, %24, %13 : vector<256x1xi1>, vector<256x1xi32>
    %cst_10 = arith.constant 0.000000e+00 : f32
    %26 = vector.broadcast %cst_10 : f32 to vector<1x64xf32>
    %c0_i32_11 = arith.constant 0 : i32
    %27 = vector.broadcast %c0_i32_11 : i32 to vector<256x1xi32>
    %28 = arith.cmpi eq, %25, %27 : vector<256x1xi32>
    %29 = vector.extract_strided_slice %8 {offsets = [0, 0], sizes = [255, 64], strides = [1, 1]} : vector<256x64xf32> to vector<255x64xf32>
    %30 = tpu.concatenate %26, %29 in 0 : vector<1x64xf32>, vector<255x64xf32> -> vector<256x64xf32>
    %cst_12 = arith.constant 0.000000e+00 : f32
    %31 = vector.shape_cast %28 : vector<256x1xi1> to vector<256x1xi1>
    %32 = vector.broadcast %31 : vector<256x1xi1> to vector<256x64xi1>
    %33 = vector.broadcast %cst_12 : f32 to vector<256x64xf32>
    %34 = arith.select %32, %33, %30 : vector<256x64xi1>, vector<256x64xf32>
    %c15_i32 = arith.constant 15 : i32
    %35 = vector.broadcast %c15_i32 : i32 to vector<256x1xi32>
    %36 = arith.cmpi eq, %25, %35 : vector<256x1xi32>
    %37 = vector.extract_strided_slice %8 {offsets = [1, 0], sizes = [255, 64], strides = [1, 1]} : vector<256x64xf32> to vector<255x64xf32>
    %38 = tpu.concatenate %37, %26 in 0 : vector<255x64xf32>, vector<1x64xf32> -> vector<256x64xf32>
    %cst_13 = arith.constant 0.000000e+00 : f32
    %39 = vector.shape_cast %36 : vector<256x1xi1> to vector<256x1xi1>
    %40 = vector.broadcast %39 : vector<256x1xi1> to vector<256x64xi1>
    %41 = vector.broadcast %cst_13 : f32 to vector<256x64xf32>
    %42 = arith.select %40, %41, %38 : vector<256x64xi1>, vector<256x64xf32>
    %43 = tpu.concatenate %34, %8, %42 in 1 : vector<256x64xf32>, vector<256x64xf32>, vector<256x64xf32> -> vector<256x192xf32>
    %44 = arith.truncf %43 : vector<256x192xf32> to vector<256x192xbf16>
    %cst_14 = arith.constant 0.000000e+00 : bf16
    %45 = vector.broadcast %cst_14 : bf16 to vector<16x192xbf16>
    %46 = vector.extract_strided_slice %44 {offsets = [0, 0], sizes = [240, 192], strides = [1, 1]} : vector<256x192xbf16> to vector<240x192xbf16>
    %47 = tpu.concatenate %45, %46 in 0 : vector<16x192xbf16>, vector<240x192xbf16> -> vector<256x192xbf16>
    %48 = vector.extract_strided_slice %44 {offsets = [16, 0], sizes = [240, 192], strides = [1, 1]} : vector<256x192xbf16> to vector<240x192xbf16>
    %49 = tpu.concatenate %48, %45 in 0 : vector<240x192xbf16>, vector<16x192xbf16> -> vector<256x192xbf16>
    %cst_15 = arith.constant 0.000000e+00 : f32
    %50 = vector.broadcast %cst_15 : f32 to vector<256x64xf32>
    %c0_16 = arith.constant 0 : index
    %c0_17 = arith.constant 0 : index
    %c0_18 = arith.constant 0 : index
    %51 = vector.load %arg4[%c0_16, %c0_17, %c0_18] : memref<3x192x64xbf16, #tpu.memory_space<vmem>>, vector<1x192x64xbf16>
    %52 = vector.shape_cast %51 : vector<1x192x64xbf16> to vector<192x64xbf16>
    %cst_19 = arith.constant dense<0.000000e+00> : vector<256x64xf32>
    %53 = tpu.matmul %47, %52, %cst_19 {dimension_numbers = #tpu.dot_dimension_numbers<[1], [0], [0], [1], [0, 0, 1, 1], [], []>} : vector<256x192xbf16>, vector<192x64xbf16>, vector<256x64xf32> -> vector<256x64xf32>
    %54 = arith.addf %50, %53 : vector<256x64xf32>
    %c1 = arith.constant 1 : index
    %c0_20 = arith.constant 0 : index
    %c0_21 = arith.constant 0 : index
    %55 = vector.load %arg4[%c1, %c0_20, %c0_21] : memref<3x192x64xbf16, #tpu.memory_space<vmem>>, vector<1x192x64xbf16>
    %56 = vector.shape_cast %55 : vector<1x192x64xbf16> to vector<192x64xbf16>
    %cst_22 = arith.constant dense<0.000000e+00> : vector<256x64xf32>
    %57 = tpu.matmul %44, %56, %cst_22 {dimension_numbers = #tpu.dot_dimension_numbers<[1], [0], [0], [1], [0, 0, 1, 1], [], []>} : vector<256x192xbf16>, vector<192x64xbf16>, vector<256x64xf32> -> vector<256x64xf32>
    %58 = arith.addf %54, %57 : vector<256x64xf32>
    %c2 = arith.constant 2 : index
    %c0_23 = arith.constant 0 : index
    %c0_24 = arith.constant 0 : index
    %59 = vector.load %arg4[%c2, %c0_23, %c0_24] : memref<3x192x64xbf16, #tpu.memory_space<vmem>>, vector<1x192x64xbf16>
    %60 = vector.shape_cast %59 : vector<1x192x64xbf16> to vector<192x64xbf16>
    %cst_25 = arith.constant dense<0.000000e+00> : vector<256x64xf32>
    %61 = tpu.matmul %49, %60, %cst_25 {dimension_numbers = #tpu.dot_dimension_numbers<[1], [0], [0], [1], [0, 0, 1, 1], [], []>} : vector<256x192xbf16>, vector<192x64xbf16>, vector<256x64xf32> -> vector<256x64xf32>
    %62 = arith.addf %58, %61 : vector<256x64xf32>
    %c0_26 = arith.constant 0 : index
    %c0_27 = arith.constant 0 : index
    %63 = vector.load %arg5[%c0_26, %c0_27] : memref<1x64xf32, #tpu.memory_space<vmem>>, vector<1x64xf32>
    %64 = vector.broadcast %63 : vector<1x64xf32> to vector<256x64xf32>
    %65 = arith.addf %62, %64 : vector<256x64xf32>
    %cst_28 = arith.constant 0.000000e+00 : f32
    %66 = vector.broadcast %cst_28 : f32 to vector<256x64xf32>
    %67 = arith.maximumf %65, %66 : vector<256x64xf32>
    %68 = arith.truncf %67 : vector<256x64xf32> to vector<256x64xbf16>
    %69 = tpu.concatenate %68, %1 in 1 : vector<256x64xbf16>, vector<256x64xbf16> -> vector<256x128xbf16>
    %c0_29 = arith.constant 0 : index
    %c0_30 = arith.constant 0 : index
    %70 = vector.load %arg6[%c0_29, %c0_30] : memref<128x256xbf16, #tpu.memory_space<vmem>>, vector<128x256xbf16>
    %cst_31 = arith.constant dense<0.000000e+00> : vector<256x256xf32>
    %71 = tpu.matmul %69, %70, %cst_31 {dimension_numbers = #tpu.dot_dimension_numbers<[1], [0], [0], [1], [0, 0, 1, 1], [], []>} : vector<256x128xbf16>, vector<128x256xbf16>, vector<256x256xf32> -> vector<256x256xf32>
    %c0_32 = arith.constant 0 : index
    %c0_33 = arith.constant 0 : index
    %72 = vector.load %arg7[%c0_32, %c0_33] : memref<1x256xf32, #tpu.memory_space<vmem>>, vector<1x256xf32>
    %73 = vector.broadcast %72 : vector<1x256xf32> to vector<256x256xf32>
    %74 = arith.addf %71, %73 : vector<256x256xf32>
    %cst_34 = arith.constant 0.000000e+00 : f32
    %75 = vector.broadcast %cst_34 : f32 to vector<256x256xf32>
    %76 = arith.maximumf %74, %75 : vector<256x256xf32>
    %c0_35 = arith.constant 0 : index
    %c0_36 = arith.constant 0 : index
    %c0_37 = arith.constant 0 : index
    %77 = vector.load %arg8[%c0_35, %c0_36, %c0_37] : memref<1x256x256xf32, #tpu.memory_space<vmem>>, vector<1x256x256xf32>
    %78 = vector.shape_cast %77 : vector<1x256x256xf32> to vector<256x256xf32>
    %79 = vector.shape_cast %76 : vector<256x256xf32> to vector<1x256x256xf32>
    tpu.vector_store %arg8[%c0_35, %c0_36, %c0_37], %79 {strides = array<i32>} : memref<1x256x256xf32, #tpu.memory_space<vmem>>, vector<1x256x256xf32>,
    return
  }
  func.func @transform_0(%arg0: i32) -> (i32, i32, i32) {
    %c0_i32 = arith.constant 0 : i32
    %c0_i32_0 = arith.constant 0 : i32
    %c0_i32_1 = arith.constant 0 : i32
    return %arg0, %c0_i32, %c0_i32_0 : i32, i32, i32
  }
  func.func @transform_1(%arg0: i32) -> (i32, i32) {
    %c0_i32 = arith.constant 0 : i32
    %c0_i32_0 = arith.constant 0 : i32
    %c0_i32_1 = arith.constant 0 : i32
    return %c0_i32, %c0_i32_0 : i32, i32
  }
  func.func @transform_2(%arg0: i32) -> (i32, i32) {
    %c0_i32 = arith.constant 0 : i32
    %c0_i32_0 = arith.constant 0 : i32
    %c0_i32_1 = arith.constant 0 : i32
    return %c0_i32, %c0_i32_0 : i32, i32
  }
  func.func @transform_3(%arg0: i32) -> (i32, i32, i32) {
    %c0_i32 = arith.constant 0 : i32
    %c0_i32_0 = arith.constant 0 : i32
    %c0_i32_1 = arith.constant 0 : i32
    %c0_i32_2 = arith.constant 0 : i32
    return %c0_i32, %c0_i32_0, %c0_i32_1 : i32, i32, i32
  }
  func.func @transform_4(%arg0: i32) -> (i32, i32) {
    %c0_i32 = arith.constant 0 : i32
    %c0_i32_0 = arith.constant 0 : i32
    %c0_i32_1 = arith.constant 0 : i32
    return %c0_i32, %c0_i32_0 : i32, i32
  }
  func.func @transform_5(%arg0: i32) -> (i32, i32) {
    %c0_i32 = arith.constant 0 : i32
    %c0_i32_0 = arith.constant 0 : i32
    %c0_i32_1 = arith.constant 0 : i32
    return %c0_i32, %c0_i32_0 : i32, i32
  }
  func.func @transform_6(%arg0: i32) -> (i32, i32) {
    %c0_i32 = arith.constant 0 : i32
    %c0_i32_0 = arith.constant 0 : i32
    %c0_i32_1 = arith.constant 0 : i32
    return %c0_i32, %c0_i32_0 : i32, i32
  }
  func.func @transform_7(%arg0: i32) -> (i32, i32, i32) {
    %c0_i32 = arith.constant 0 : i32
    %c0_i32_0 = arith.constant 0 : i32
    %c0_i32_1 = arith.constant 0 : i32
    return %arg0, %c0_i32, %c0_i32_0 : i32, i32, i32
  }
}

</mosaic_0001>

<llo_original>
// kernel: bottleneck_forward.1
$region0: #{bottleneck_forward.1}
  #allocation0 [shape = 'u32[]', space=smem, size = 0x4, offset = 0x4, fixed_abs, tag = 'smem constant byte address 0x4 - core index']
  #allocation1 [shape = 'u32[144,128]{1,0:T(1,128)}', space=vmem, size = 0x12000, scoped, tag = 'internal scratch']
  %s0 = inlined_call_operand.vmem [shape: bf16[2,256,64], index: 0, kind: input, shape index: {}]
  %s1 = inlined_call_operand.vmem [shape: bf16[64,64], index: 1, kind: input, shape index: {}]
  %s2 = inlined_call_operand.vmem [shape: f32[1,64], index: 2, kind: input, shape index: {}]
  %s3 = inlined_call_operand.vmem [shape: bf16[3,192,64], index: 3, kind: input, shape index: {}]
  %s4 = inlined_call_operand.vmem [shape: f32[1,64], index: 4, kind: input, shape index: {}]
  %s5 = inlined_call_operand.vmem [shape: bf16[128,256], index: 5, kind: input, shape index: {}]
  %s6 = inlined_call_operand.vmem [shape: f32[1,256], index: 6, kind: input, shape index: {}]
  %s7 = inlined_call_operand.hbm [shape: f32[2,256,256], index: 7, kind: output, shape index: {}]
  %s8 = sld [smem:[#allocation0]]
  $region61: #{bottleneck_forward.1} parent=0
    _
  %s10 = ssub.s32 1, %s8
  %s11 = scalar_select 0, %s10, %s8
  $region1: #{bottleneck_forward.1} parent=0
    #allocation2 [shape = 'u8[524288]{0}', space=vmem, size = 0x80000, scoped, tag = 'output window, operand 0']
    #allocation3 [shape = 's32[2]{0}', space=sflag, size = 0x8, scoped, tag = 'scoped memory for bottleneck_forward.1']
    %12 = vsyncpa [#allocation3], 0
    %s13 = scalar_lea.sflag [#allocation3], 1
    %14 = vsyncpa %s13, 0
    loop: start=0, step=1, limit=4
    $region2: #{bottleneck_forward.1} parent=1 // loop_pre_header
      _
    $region3: #{bottleneck_forward.1} parent=1 // loop_header
      %s16 = sphi 0, %s20
      %p17 = scmp.ge.s32.totalorder %s16, 4
      %s26 = sphi 0, %s28
      %s29 = sphi 0, %s26
      %s30 = sphi 0, %s29
      %s46 = sphi 0, %s30
      %s50 = sphi 0, %s50
      %s52 = sphi 0, %s50
      %s53 = sphi 0, %s52
      %s67 = sphi 0, %s53
      %s71 = sphi 0, %s71
      %s73 = sphi 0, %s71
      %s74 = sphi 0, %s73
      %s88 = sphi 0, %s74
      %s92 = sphi 0, %s92
      %s94 = sphi 0, %s92
      %s95 = sphi 0, %s94
      %s109 = sphi 0, %s95
      %s113 = sphi 0, %s113
      %s115 = sphi 0, %s113
      %s116 = sphi 0, %s115
      %s130 = sphi 0, %s116
      %s134 = sphi 0, %s134
      %s136 = sphi 0, %s134
      %s137 = sphi 0, %s136
      %s151 = sphi 0, %s137
      %s155 = sphi 0, %s155
      %s157 = sphi 0, %s155
      %s158 = sphi 0, %s157
      %s172 = sphi 0, %s158
      %s178 = sphi 0, %s180
      %s181 = sphi 0, %s178
      %s182 = sphi 0, %s181
      %s198 = sphi 0, %s182
    $region4: #{bottleneck_forward.1} parent=1 // loop_header_branch
      %19 = sbr.rel (%p17) target = $region8
    $region5: #{bottleneck_forward.1} parent=1 // loop_body
      %s21 = ssub.s32 %s16, 1
      %s22 = ssub.s32 %s16, 2
      %s23 = sadd.s32 %s16, 1
      %s24 = ssub.s32 %s16, %s23
      %p25 = scmp.eq.s32.totalorder %s24, 0
      %s27 = sadd.s32 %s26, 1
      %s28 = scalar_select %p25, %s26, %s27
      %p31 = pneg %p25
      %p32 = scmp.eq.s32.totalorder %s16, 1
      %p33 = por %p31, %p32
      %p34 = scmp.ne.s32.totalorder %s26, %s29
      %p35 = scmp.eq.s32.totalorder %s16, 0
      %p36 = por %p34, %p35
      %p37 = scmp.ne.s32.totalorder %s26, %s29
      %p38 = scmp.eq.s32.totalorder %s21, 1
      %p39 = por %p37, %p38
      %p40 = scmp.ne.s32.totalorder %s29, %s30
      %p41 = scmp.eq.s32.totalorder %s21, 0
      %p42 = por %p40, %p41
      %p43 = scmp.ne.s32.totalorder %s29, %s30
      %p44 = scmp.eq.s32.totalorder %s22, 1
      %p45 = por %p43, %p44
      %p47 = scmp.ne.s32.totalorder %s30, %s46
      %p48 = scmp.eq.s32.totalorder %s22, 0
      %p49 = por %p47, %p48
      %s51 = sadd.s32 %s50, 1
      %p54 = scmp.eq.s32.totalorder %s16, 1
      %p55 = scmp.ne.s32.totalorder %s50, %s52
      %p56 = scmp.eq.s32.totalorder %s16, 0
      %p57 = por %p55, %p56
      %p58 = scmp.ne.s32.totalorder %s50, %s52
      %p59 = scmp.eq.s32.totalorder %s21, 1
      %p60 = por %p58, %p59
      %p61 = scmp.ne.s32.totalorder %s52, %s53
      %p62 = scmp.eq.s32.totalorder %s21, 0
      %p63 = por %p61, %p62
      %p64 = scmp.ne.s32.totalorder %s52, %s53
      %p65 = scmp.eq.s32.totalorder %s22, 1
      %p66 = por %p64, %p65
      %p68 = scmp.ne.s32.totalorder %s53, %s67
      %p69 = scmp.eq.s32.totalorder %s22, 0
      %p70 = por %p68, %p69
      %s72 = sadd.s32 %s71, 1
      %p75 = scmp.eq.s32.totalorder %s16, 1
      %p76 = scmp.ne.s32.totalorder %s71, %s73
      %p77 = scmp.eq.s32.totalorder %s16, 0
      %p78 = por %p76, %p77
      %p79 = scmp.ne.s32.totalorder %s71, %s73
      %p80 = scmp.eq.s32.totalorder %s21, 1
      %p81 = por %p79, %p80
      %p82 = scmp.ne.s32.totalorder %s73, %s74
      %p83 = scmp.eq.s32.totalorder %s21, 0
      %p84 = por %p82, %p83
      %p85 = scmp.ne.s32.totalorder %s73, %s74
      %p86 = scmp.eq.s32.totalorder %s22, 1
      %p87 = por %p85, %p86
      %p89 = scmp.ne.s32.totalorder %s74, %s88
      %p90 = scmp.eq.s32.totalorder %s22, 0
      %p91 = por %p89, %p90
      %s93 = sadd.s32 %s92, 1
      %p96 = scmp.eq.s32.totalorder %s16, 1
      %p97 = scmp.ne.s32.totalorder %s92, %s94
      %p98 = scmp.eq.s32.totalorder %s16, 0
      %p99 = por %p97, %p98
      %p100 = scmp.ne.s32.totalorder %s92, %s94
      %p101 = scmp.eq.s32.totalorder %s21, 1
      %p102 = por %p100, %p101
      %p103 = scmp.ne.s32.totalorder %s94, %s95
      %p104 = scmp.eq.s32.totalorder %s21, 0
      %p105 = por %p103, %p104
      %p106 = scmp.ne.s32.totalorder %s94, %s95
      %p107 = scmp.eq.s32.totalorder %s22, 1
      %p108 = por %p106, %p107
      %p110 = scmp.ne.s32.totalorder %s95, %s109
      %p111 = scmp.eq.s32.totalorder %s22, 0
      %p112 = por %p110, %p111
      %s114 = sadd.s32 %s113, 1
      %p117 = scmp.eq.s32.totalorder %s16, 1
      %p118 = scmp.ne.s32.totalorder %s113, %s115
      %p119 = scmp.eq.s32.totalorder %s16, 0
      %p120 = por %p118, %p119
      %p121 = scmp.ne.s32.totalorder %s113, %s115
      %p122 = scmp.eq.s32.totalorder %s21, 1
      %p123 = por %p121, %p122
      %p124 = scmp.ne.s32.totalorder %s115, %s116
      %p125 = scmp.eq.s32.totalorder %s21, 0
      %p126 = por %p124, %p125
      %p127 = scmp.ne.s32.totalorder %s115, %s116
      %p128 = scmp.eq.s32.totalorder %s22, 1
      %p129 = por %p127, %p128
      %p131 = scmp.ne.s32.totalorder %s116, %s130
      %p132 = scmp.eq.s32.totalorder %s22, 0
      %p133 = por %p131, %p132
      %s135 = sadd.s32 %s134, 1
      %p138 = scmp.eq.s32.totalorder %s16, 1
      %p139 = scmp.ne.s32.totalorder %s134, %s136
      %p140 = scmp.eq.s32.totalorder %s16, 0
      %p141 = por %p139, %p140
      %p142 = scmp.ne.s32.totalorder %s134, %s136
      %p143 = scmp.eq.s32.totalorder %s21, 1
      %p144 = por %p142, %p143
      %p145 = scmp.ne.s32.totalorder %s136, %s137
      %p146 = scmp.eq.s32.totalorder %s21, 0
      %p147 = por %p145, %p146
      %p148 = scmp.ne.s32.totalorder %s136, %s137
      %p149 = scmp.eq.s32.totalorder %s22, 1
      %p150 = por %p148, %p149
      %p152 = scmp.ne.s32.totalorder %s137, %s151
      %p153 = scmp.eq.s32.totalorder %s22, 0
      %p154 = por %p152, %p153
      %s156 = sadd.s32 %s155, 1
      %p159 = scmp.eq.s32.totalorder %s16, 1
      %p160 = scmp.ne.s32.totalorder %s155, %s157
      %p161 = scmp.eq.s32.totalorder %s16, 0
      %p162 = por %p160, %p161
      %p163 = scmp.ne.s32.totalorder %s155, %s157
      %p164 = scmp.eq.s32.totalorder %s21, 1
      %p165 = por %p163, %p164
      %p166 = scmp.ne.s32.totalorder %s157, %s158
      %p167 = scmp.eq.s32.totalorder %s21, 0
      %p168 = por %p166, %p167
      %p169 = scmp.ne.s32.totalorder %s157, %s158
      %p170 = scmp.eq.s32.totalorder %s22, 1
      %p171 = por %p169, %p170
      %p173 = scmp.ne.s32.totalorder %s158, %s172
      %p174 = scmp.eq.s32.totalorder %s22, 0
      %p175 = por %p173, %p174
      %s176 = ssub.s32 %s16, %s23
      %p177 = scmp.eq.s32.totalorder %s176, 0
      %s179 = sadd.s32 %s178, 1
      %s180 = scalar_select %p177, %s178, %s179
      %p183 = pneg %p177
      %p184 = scmp.eq.s32.totalorder %s16, 1
      %p185 = por %p183, %p184
      %p186 = scmp.ne.s32.totalorder %s178, %s181
      %p187 = scmp.eq.s32.totalorder %s16, 0
      %p188 = por %p186, %p187
      %p189 = scmp.ne.s32.totalorder %s178, %s181
      %p190 = scmp.eq.s32.totalorder %s21, 1
      %p191 = por %p189, %p190
      %p192 = scmp.ne.s32.totalorder %s181, %s182
      %p193 = scmp.eq.s32.totalorder %s21, 0
      %p194 = por %p192, %p193
      %p195 = scmp.ne.s32.totalorder %s181, %s182
      %p196 = scmp.eq.s32.totalorder %s22, 1
      %p197 = por %p195, %p196
      %p199 = scmp.ne.s32.totalorder %s182, %s198
      %p200 = scmp.eq.s32.totalorder %s22, 0
      %p201 = por %p199, %p200
      %p202 = scmp.le.s32.totalorder 1, %s16
      %p203 = scmp.lt.s32.totalorder %s16, 3
      %p204 = pnand %p202, %p203
      %p205 = pneg %p204
      // Predicated region
      $region9: #{bottleneck_forward.1} parent=5 // pred_check
        _
      $region10: #{bottleneck_forward.1} parent=5 // pred_check_branch
        %207 = sbr.rel (%p204) target = $region12
      $region11: #{bottleneck_forward.1} parent=5 // pred_region
        %s208 = ssub.s32 %s16, 1
        // Predicated region
        $region13: #{bottleneck_forward.1} parent=11 // pred_check
          %p209 = pneg %p63
        $region14: #{bottleneck_forward.1} parent=11 // pred_check_branch
          %211 = sbr.rel (%p209) target = $region16
        $region15: #{bottleneck_forward.1} parent=11 // pred_region
          _
        $region16: #{bottleneck_forward.1} parent=11 // pred_fallthru
          _
        // Predicated region
        $region17: #{bottleneck_forward.1} parent=11 // pred_check
          %p212 = pneg %p84
        $region18: #{bottleneck_forward.1} parent=11 // pred_check_branch
          %214 = sbr.rel (%p212) target = $region20
        $region19: #{bottleneck_forward.1} parent=11 // pred_region
          _
        $region20: #{bottleneck_forward.1} parent=11 // pred_fallthru
          _
        // Predicated region
        $region21: #{bottleneck_forward.1} parent=11 // pred_check
          %p215 = pneg %p105
        $region22: #{bottleneck_forward.1} parent=11 // pred_check_branch
          %217 = sbr.rel (%p215) target = $region24
        $region23: #{bottleneck_forward.1} parent=11 // pred_region
          _
        $region24: #{bottleneck_forward.1} parent=11 // pred_fallthru
          _
        // Predicated region
        $region25: #{bottleneck_forward.1} parent=11 // pred_check
          %p218 = pneg %p126
        $region26: #{bottleneck_forward.1} parent=11 // pred_check_branch
          %220 = sbr.rel (%p218) target = $region28
        $region27: #{bottleneck_forward.1} parent=11 // pred_region
          _
        $region28: #{bottleneck_forward.1} parent=11 // pred_fallthru
          _
        // Predicated region
        $region29: #{bottleneck_forward.1} parent=11 // pred_check
          %p221 = pneg %p147
        $region30: #{bottleneck_forward.1} parent=11 // pred_check_branch
          %223 = sbr.rel (%p221) target = $region32
        $region31: #{bottleneck_forward.1} parent=11 // pred_region
          _
        $region32: #{bottleneck_forward.1} parent=11 // pred_fallthru
          _
        // Predicated region
        $region33: #{bottleneck_forward.1} parent=11 // pred_check
          %p224 = pneg %p168
        $region34: #{bottleneck_forward.1} parent=11 // pred_check_branch
          %226 = sbr.rel (%p224) target = $region36
        $region35: #{bottleneck_forward.1} parent=11 // pred_region
          _
        $region36: #{bottleneck_forward.1} parent=11 // pred_fallthru
          _
      $region12: #{bottleneck_forward.1} parent=5 // pred_fallthru
        _
      %p227 = scmp.lt.s32.totalorder %s16, 2
      // Predicated region
      $region37: #{bottleneck_forward.1} parent=5 // pred_check
        %p228 = pneg %p227
      $region38: #{bottleneck_forward.1} parent=5 // pred_check_branch
        %230 = sbr.rel (%p228) target = $region40
      $region39: #{bottleneck_forward.1} parent=5 // pred_region
        // Predicated region
        $region41: #{bottleneck_forward.1} parent=39 // pred_check
          %p231 = pneg %p36
        $region42: #{bottleneck_forward.1} parent=39 // pred_check_branch
          %233 = sbr.rel (%p231) target = $region44
        $region43: #{bottleneck_forward.1} parent=39 // pred_region
          %p234 = scmp.lt.s32.totalorder %s16, 1
          %s235 = scalar_select %p234, %s16, 1
          %s236 = smul.addr %s235, 32
          %s237 = smul.addr %s236, 4
          %s238 = scalar_lea.vmem %s0, %s237
        $region44: #{bottleneck_forward.1} parent=39 // pred_fallthru
          _
      $region40: #{bottleneck_forward.1} parent=5 // pred_fallthru
        _
      %p239 = scmp.le.s32.totalorder 1, %s16
      %p240 = scmp.lt.s32.totalorder %s16, 3
      %p241 = pnand %p239, %p240
      %p242 = pneg %p241
      // Predicated region
      $region45: #{bottleneck_forward.1} parent=5 // pred_check
        _
      $region46: #{bottleneck_forward.1} parent=5 // pred_check_branch
        %244 = sbr.rel (%p241) target = $region48
      $region47: #{bottleneck_forward.1} parent=5 // pred_region
        %s245 = ssub.s32 %s16, 1
        %p246 = scmp.lt.s32.totalorder %s21, 1
        %s247 = scalar_select %p246, %s21, 1
        %s248 = smul.addr %s247, 32
        %s249 = smul.addr %s248, 4
        %s250 = scalar_lea.vmem %s0, %s249
        %p251 = pneg %p42
        %p252 = pneg %p39
        %p253 = pneg %p63
        %p254 = pneg %p60
        %p255 = pneg %p84
        %p256 = pneg %p81
        %p257 = pneg %p105
        %p258 = pneg %p102
        %p259 = pneg %p126
        %p260 = pneg %p123
        %p261 = pneg %p147
        %p262 = pneg %p144
        %p263 = pneg %p168
        %p264 = pneg %p165
        %p265 = pneg %p194
        %p266 = pneg %p191
        %s267 = sand.u32 %s181, 1
        %s268 = scalar_lea.sflag [#allocation3], %s267
        %s269 = sand.u32 %s181, 1
        %s270 = smul.addr %s269, 512
        %s271 = scalar_lea.vmem [#allocation2], %s270
        %p272 = scmp.lt.s32.totalorder %s21, 1
        %s273 = scalar_select %p272, %s21, 1
        %s274 = smul.addr %s273, 32
        %s275 = smul.addr %s274, 4
        %s276 = scalar_lea.vmem %s0, %s275
        %v278 = vld [vmem:[%s276] sm:$0xf]
        %v279 = vld [vmem:[%s276 + $0x4] sm:$0xf]
        %v280 = vld [vmem:[%s276 + $0x8] sm:$0xf]
        %v281 = vld [vmem:[%s276 + $0xc] sm:$0xf]
        %v282 = vld [vmem:[%s276 + $0x10] sm:$0xf]
        %v283 = vld [vmem:[%s276 + $0x14] sm:$0xf]
        %v284 = vld [vmem:[%s276 + $0x18] sm:$0xf]
        %v285 = vld [vmem:[%s276 + $0x1c] sm:$0xf]
        %v286 = vld [vmem:[%s276 + $0x20] sm:$0xf]
        %v287 = vld [vmem:[%s276 + $0x24] sm:$0xf]
        %v288 = vld [vmem:[%s276 + $0x28] sm:$0xf]
        %v289 = vld [vmem:[%s276 + $0x2c] sm:$0xf]
        %v290 = vld [vmem:[%s276 + $0x30] sm:$0xf]
        %v291 = vld [vmem:[%s276 + $0x34] sm:$0xf]
        %v292 = vld [vmem:[%s276 + $0x38] sm:$0xf]
        %v293 = vld [vmem:[%s276 + $0x3c] sm:$0xf]
        %v294 = vld [vmem:[%s276 + $0x40] sm:$0xf]
        %v295 = vld [vmem:[%s276 + $0x44] sm:$0xf]
        %v296 = vld [vmem:[%s276 + $0x48] sm:$0xf]
        %v297 = vld [vmem:[%s276 + $0x4c] sm:$0xf]
        %v298 = vld [vmem:[%s276 + $0x50] sm:$0xf]
        %v299 = vld [vmem:[%s276 + $0x54] sm:$0xf]
        %v300 = vld [vmem:[%s276 + $0x58] sm:$0xf]
        %v301 = vld [vmem:[%s276 + $0x5c] sm:$0xf]
        %v302 = vld [vmem:[%s276 + $0x60] sm:$0xf]
        %v303 = vld [vmem:[%s276 + $0x64] sm:$0xf]
        %v304 = vld [vmem:[%s276 + $0x68] sm:$0xf]
        %v305 = vld [vmem:[%s276 + $0x6c] sm:$0xf]
        %v306 = vld [vmem:[%s276 + $0x70] sm:$0xf]
        %v307 = vld [vmem:[%s276 + $0x74] sm:$0xf]
        %v308 = vld [vmem:[%s276 + $0x78] sm:$0xf]
        %v309 = vld [vmem:[%s276 + $0x7c] sm:$0xf]
        %v310 = vld [vmem:[%s1] sm:$0xf]
        %v311 = vld [vmem:[%s1 + $0x4] sm:$0xf]
        %v312 = vld [vmem:[%s1 + $0x8] sm:$0xf]
        %v313 = vld [vmem:[%s1 + $0xc] sm:$0xf]
        %v314 = vld [vmem:[%s1 + $0x10] sm:$0xf]
        %v315 = vld [vmem:[%s1 + $0x14] sm:$0xf]
        %v316 = vld [vmem:[%s1 + $0x18] sm:$0xf]
        %v317 = vld [vmem:[%s1 + $0x1c] sm:$0xf]
        %v318 = vld [vmem:[%s2] sm:$0x1]
        %v320 = vlaneseq
        %v321 = vshrl.u32 %v320, 7
        %v322 = vsub.s32 0, %v321
        %v323 = vrot.slane %v318, %v322
        %v357 = vunpack.c.l.b16 %v278
        %v358 = vunpack.c.l.b16 %v279
        %v359 = vunpack.c.l.b16 %v280
        %v360 = vunpack.c.l.b16 %v281
        %v361 = vunpack.c.l.b16 %v282
        %v362 = vunpack.c.l.b16 %v283
        %v363 = vunpack.c.l.b16 %v284
        %v364 = vunpack.c.l.b16 %v285
        %v365 = vunpack.c.l.b16 %v286
        %v366 = vunpack.c.l.b16 %v287
        %v367 = vunpack.c.l.b16 %v288
        %v368 = vunpack.c.l.b16 %v289
        %v369 = vunpack.c.l.b16 %v290
        %v370 = vunpack.c.l.b16 %v291
        %v371 = vunpack.c.l.b16 %v292
        %v372 = vunpack.c.l.b16 %v293
        %v373 = vunpack.c.l.b16 %v294
        %v374 = vunpack.c.l.b16 %v295
        %v375 = vunpack.c.l.b16 %v296
        %v376 = vunpack.c.l.b16 %v297
        %v377 = vunpack.c.l.b16 %v298
        %v378 = vunpack.c.l.b16 %v299
        %v379 = vunpack.c.l.b16 %v300
        %v380 = vunpack.c.l.b16 %v301
        %v381 = vunpack.c.l.b16 %v302
        %v382 = vunpack.c.l.b16 %v303
        %v383 = vunpack.c.l.b16 %v304
        %v384 = vunpack.c.l.b16 %v305
        %v385 = vunpack.c.l.b16 %v306
        %v386 = vunpack.c.l.b16 %v307
        %v387 = vunpack.c.l.b16 %v308
        %v388 = vunpack.c.l.b16 %v309
        %v389 = vpack.c.b16 %v358, %v357
        %v390 = vpack.c.b16 %v360, %v359
        %v391 = vpack.c.b16 %v362, %v361
        %v392 = vpack.c.b16 %v364, %v363
        %v393 = vpack.c.b16 %v366, %v365
        %v394 = vpack.c.b16 %v368, %v367
        %v395 = vpack.c.b16 %v370, %v369
        %v396 = vpack.c.b16 %v372, %v371
        %v397 = vpack.c.b16 %v374, %v373
        %v398 = vpack.c.b16 %v376, %v375
        %v399 = vpack.c.b16 %v378, %v377
        %v400 = vpack.c.b16 %v380, %v379
        %v401 = vpack.c.b16 %v382, %v381
        %v402 = vpack.c.b16 %v384, %v383
        %v403 = vpack.c.b16 %v386, %v385
        %v404 = vpack.c.b16 %v388, %v387
        %v413 = vunpack.c.l.b16 %v310
        %v414 = vunpack.c.l.b16 %v311
        %v415 = vunpack.c.l.b16 %v312
        %v416 = vunpack.c.l.b16 %v313
        %v417 = vunpack.c.l.b16 %v314
        %v418 = vunpack.c.l.b16 %v315
        %v419 = vunpack.c.l.b16 %v316
        %v420 = vunpack.c.l.b16 %v317
        %v421 = vpack.c.b16 %v414, %v413
        %v422 = vpack.c.b16 %v416, %v415
        %v423 = vpack.c.b16 %v418, %v417
        %v424 = vpack.c.b16 %v420, %v419
        %vm429 = vcmask 523264
        %v431 = vsel %vm429, %v389, 0
        %v434 = vsel %vm429, %v390, 0
        %v437 = vsel %vm429, %v391, 0
        %v440 = vsel %vm429, %v392, 0
        %v443 = vsel %vm429, %v393, 0
        %v446 = vsel %vm429, %v394, 0
        %v449 = vsel %vm429, %v395, 0
        %v452 = vsel %vm429, %v396, 0
        %v455 = vsel %vm429, %v397, 0
        %v458 = vsel %vm429, %v398, 0
        %v461 = vsel %vm429, %v399, 0
        %v464 = vsel %vm429, %v400, 0
        %v467 = vsel %vm429, %v401, 0
        %v470 = vsel %vm429, %v402, 0
        %v473 = vsel %vm429, %v403, 0
        %v476 = vsel %vm429, %v404, 0
        %478 = vmatprep.subr.bf16.mxu0 0
        %479 = vmatpush1.bf16.msra.mxu0 %v421
        %480 = vmatprep.subr.bf16.mxu0 0
        %481 = vmatpush1.bf16.msra.mxu0 %v422
        %482 = vmatprep.subr.bf16.mxu0 0
        %483 = vmatpush1.bf16.msra.mxu0 %v423
        %484 = vmatprep.subr.bf16.mxu0 0
        %485 = vmatpush1.bf16.msra.mxu0 %v424
        %486 = vmatprep.subr.bf16.mxu0 0
        %487 = vmatpush1.bf16.msra.mxu0 0
        %488 = vmatprep.subr.bf16.mxu0 0
        %489 = vmatpush1.bf16.msra.mxu0 0
        %490 = vmatprep.subr.bf16.mxu0 0
        %491 = vmatpush1.bf16.msra.mxu0 0
        %492 = vmatprep.subr.bf16.mxu0 0
        %493 = vmatpush1.bf16.msra.mxu0 0
        %494 = vmatprep.subr.bf16.mxu0 0
        %495 = vmatpush1.bf16.msra.mxu0 0
        %496 = vmatprep.subr.bf16.mxu0 0
        %497 = vmatpush1.bf16.msra.mxu0 0
        %498 = vmatprep.subr.bf16.mxu0 0
        %499 = vmatpush1.bf16.msra.mxu0 0
        %500 = vmatprep.subr.bf16.mxu0 0
        %501 = vmatpush1.bf16.msra.mxu0 0
        %502 = vmatprep.subr.bf16.mxu0 0
        %503 = vmatpush1.bf16.msra.mxu0 0
        %504 = vmatprep.subr.bf16.mxu0 0
        %505 = vmatpush1.bf16.msra.mxu0 0
        %506 = vmatprep.subr.bf16.mxu0 0
        %507 = vmatpush1.bf16.msra.mxu0 0
        %508 = vmatprep.subr.bf16.mxu0 0
        %509 = vmatpush1.bf16.msra.mxu0 0
        %510 = vmatprep.mubr.bf16.mxu0 0
        %511 = vmatmul.mubr.bf16.gmra.mrb[0].mxu0 %v431
        %v512 = vpop.f32.mrb[0].mxu0
        %v513 = vadd.f32 %v323, %v512
        %v514 = vpop.f32.mrb[0].mxu0
        %v515 = vpop.f32.mrb[0].mxu0
        %v516 = vadd.f32 %v323, %v515
        %v517 = vpop.f32.mrb[0].mxu0
        %518 = vmatprep.mubr.bf16.mxu0 0
        %519 = vmatmul.mubr.bf16.gmra.mrb[0].mxu0 %v434
        %v520 = vpop.f32.mrb[0].mxu0
        %v521 = vadd.f32 %v323, %v520
        %v522 = vpop.f32.mrb[0].mxu0
        %v523 = vpop.f32.mrb[0].mxu0
        %v524 = vadd.f32 %v323, %v523
        %v525 = vpop.f32.mrb[0].mxu0
        %526 = vmatprep.mubr.bf16.mxu0 0
        %527 = vmatmul.mubr.bf16.gmra.mrb[0].mxu0 %v437
        %v528 = vpop.f32.mrb[0].mxu0
        %v529 = vadd.f32 %v323, %v528
        %v530 = vpop.f32.mrb[0].mxu0
        %v531 = vpop.f32.mrb[0].mxu0
        %v532 = vadd.f32 %v323, %v531
        %v533 = vpop.f32.mrb[0].mxu0
        %534 = vmatprep.mubr.bf16.mxu0 0
        %535 = vmatmul.mubr.bf16.gmra.mrb[0].mxu0 %v440
        %v536 = vpop.f32.mrb[0].mxu0
        %v537 = vadd.f32 %v323, %v536
        %v538 = vpop.f32.mrb[0].mxu0
        %v539 = vpop.f32.mrb[0].mxu0
        %v540 = vadd.f32 %v323, %v539
        %v541 = vpop.f32.mrb[0].mxu0
        %542 = vmatprep.mubr.bf16.mxu0 0
        %543 = vmatmul.mubr.bf16.gmra.mrb[0].mxu0 %v443
        %v544 = vpop.f32.mrb[0].mxu0
        %v545 = vadd.f32 %v323, %v544
        %v546 = vpop.f32.mrb[0].mxu0
        %v547 = vpop.f32.mrb[0].mxu0
        %v548 = vadd.f32 %v323, %v547
        %v549 = vpop.f32.mrb[0].mxu0
        %550 = vmatprep.mubr.bf16.mxu0 0
        %551 = vmatmul.mubr.bf16.gmra.mrb[0].mxu0 %v446
        %v552 = vpop.f32.mrb[0].mxu0
        %v553 = vadd.f32 %v323, %v552
        %v554 = vpop.f32.mrb[0].mxu0
        %v555 = vpop.f32.mrb[0].mxu0
        %v556 = vadd.f32 %v323, %v555
        %v557 = vpop.f32.mrb[0].mxu0
        %558 = vmatprep.mubr.bf16.mxu0 0
        %559 = vmatmul.mubr.bf16.gmra.mrb[0].mxu0 %v449
        %v560 = vpop.f32.mrb[0].mxu0
        %v561 = vadd.f32 %v323, %v560
        %v562 = vpop.f32.mrb[0].mxu0
        %v563 = vpop.f32.mrb[0].mxu0
        %v564 = vadd.f32 %v323, %v563
        %v565 = vpop.f32.mrb[0].mxu0
        %566 = vmatprep.mubr.bf16.mxu0 0
        %567 = vmatmul.mubr.bf16.gmra.mrb[0].mxu0 %v452
        %v568 = vpop.f32.mrb[0].mxu0
        %v569 = vadd.f32 %v323, %v568
        %v570 = vpop.f32.mrb[0].mxu0
        %v571 = vpop.f32.mrb[0].mxu0
        %v572 = vadd.f32 %v323, %v571
        %v573 = vpop.f32.mrb[0].mxu0
        %574 = vmatprep.mubr.bf16.mxu0 0
        %575 = vmatmul.mubr.bf16.gmra.mrb[0].mxu0 %v455
        %v576 = vpop.f32.mrb[0].mxu0
        %v577 = vadd.f32 %v323, %v576
        %v578 = vpop.f32.mrb[0].mxu0
        %v579 = vpop.f32.mrb[0].mxu0
        %v580 = vadd.f32 %v323, %v579
        %v581 = vpop.f32.mrb[0].mxu0
        %582 = vmatprep.mubr.bf16.mxu0 0
        %583 = vmatmul.mubr.bf16.gmra.mrb[0].mxu0 %v458
        %v584 = vpop.f32.mrb[0].mxu0
        %v585 = vadd.f32 %v323, %v584
        %v586 = vpop.f32.mrb[0].mxu0
        %v587 = vpop.f32.mrb[0].mxu0
        %v588 = vadd.f32 %v323, %v587
        %v589 = vpop.f32.mrb[0].mxu0
        %590 = vmatprep.mubr.bf16.mxu0 0
        %591 = vmatmul.mubr.bf16.gmra.mrb[0].mxu0 %v461
        %v592 = vpop.f32.mrb[0].mxu0
        %v593 = vadd.f32 %v323, %v592
        %v594 = vpop.f32.mrb[0].mxu0
        %v595 = vpop.f32.mrb[0].mxu0
        %v596 = vadd.f32 %v323, %v595
        %v597 = vpop.f32.mrb[0].mxu0
        %598 = vmatprep.mubr.bf16.mxu0 0
        %599 = vmatmul.mubr.bf16.gmra.mrb[0].mxu0 %v464
        %v600 = vpop.f32.mrb[0].mxu0
        %v601 = vadd.f32 %v323, %v600
        %v602 = vpop.f32.mrb[0].mxu0
        %v603 = vpop.f32.mrb[0].mxu0
        %v604 = vadd.f32 %v323, %v603
        %v605 = vpop.f32.mrb[0].mxu0
        %606 = vmatprep.mubr.bf16.mxu0 0
        %607 = vmatmul.mubr.bf16.gmra.mrb[0].mxu0 %v467
        %v608 = vpop.f32.mrb[0].mxu0
        %v609 = vadd.f32 %v323, %v608
        %v610 = vpop.f32.mrb[0].mxu0
        %v611 = vpop.f32.mrb[0].mxu0
        %v612 = vadd.f32 %v323, %v611
        %v613 = vpop.f32.mrb[0].mxu0
        %614 = vmatprep.mubr.bf16.mxu0 0
        %615 = vmatmul.mubr.bf16.gmra.mrb[0].mxu0 %v470
        %v616 = vpop.f32.mrb[0].mxu0
        %v617 = vadd.f32 %v323, %v616
        %v618 = vpop.f32.mrb[0].mxu0
        %v619 = vpop.f32.mrb[0].mxu0
        %v620 = vadd.f32 %v323, %v619
        %v621 = vpop.f32.mrb[0].mxu0
        %622 = vmatprep.mubr.bf16.mxu0 0
        %623 = vmatmul.mubr.bf16.gmra.mrb[0].mxu0 %v473
        %v624 = vpop.f32.mrb[0].mxu0
        %v625 = vadd.f32 %v323, %v624
        %v626 = vpop.f32.mrb[0].mxu0
        %v627 = vpop.f32.mrb[0].mxu0
        %v628 = vadd.f32 %v323, %v627
        %v629 = vpop.f32.mrb[0].mxu0
        %630 = vmatprep.mubr.bf16.mxu0 0
        %631 = vmatmul.mubr.bf16.gmra.mrb[0].mxu0 %v476
        %v632 = vpop.f32.mrb[0].mxu0
        %v633 = vadd.f32 %v323, %v632
        %v634 = vpop.f32.mrb[0].mxu0
        %v635 = vpop.f32.mrb[0].mxu0
        %v636 = vadd.f32 %v323, %v635
        %v637 = vpop.f32.mrb[0].mxu0
        %638 = vdwg.mxu0
        %v639 = vmax.f32 %v513, 0.0
        %v640 = vmax.f32 %v516, 0.0
        %v641 = vmax.f32 %v521, 0.0
        %v642 = vmax.f32 %v524, 0.0
        %v643 = vmax.f32 %v529, 0.0
        %v644 = vmax.f32 %v532, 0.0
        %v645 = vmax.f32 %v537, 0.0
        %v646 = vmax.f32 %v540, 0.0
        %v647 = vmax.f32 %v545, 0.0
        %v648 = vmax.f32 %v548, 0.0
        %v649 = vmax.f32 %v553, 0.0
        %v650 = vmax.f32 %v556, 0.0
        %v651 = vmax.f32 %v561, 0.0
        %v652 = vmax.f32 %v564, 0.0
        %v653 = vmax.f32 %v569, 0.0
        %v654 = vmax.f32 %v572, 0.0
        %v655 = vmax.f32 %v577, 0.0
        %v656 = vmax.f32 %v580, 0.0
        %v657 = vmax.f32 %v585, 0.0
        %v658 = vmax.f32 %v588, 0.0
        %v659 = vmax.f32 %v593, 0.0
        %v660 = vmax.f32 %v596, 0.0
        %v661 = vmax.f32 %v601, 0.0
        %v662 = vmax.f32 %v604, 0.0
        %v663 = vmax.f32 %v609, 0.0
        %v664 = vmax.f32 %v612, 0.0
        %v665 = vmax.f32 %v617, 0.0
        %v666 = vmax.f32 %v620, 0.0
        %v667 = vmax.f32 %v625, 0.0
        %v668 = vmax.f32 %v628, 0.0
        %v669 = vmax.f32 %v633, 0.0
        %v670 = vmax.f32 %v636, 0.0
        %v671 = vlaneseq
        %v672 = vshrl.u32 %v671, 7
        %v673 = vadd.s32 %v672, 8
        %v674 = vadd.s32 %v672, 16
        %v675 = vadd.s32 %v672, 24
        %v676 = vadd.s32 %v672, 32
        %v677 = vadd.s32 %v672, 40
        %v678 = vadd.s32 %v672, 48
        %v679 = vadd.s32 %v672, 56
        %v680 = vadd.s32 %v672, 64
        %v681 = vadd.s32 %v672, 72
        %v682 = vadd.s32 %v672, 80
        %v683 = vadd.s32 %v672, 88
        %v684 = vadd.s32 %v672, 96
        %v685 = vadd.s32 %v672, 104
        %v686 = vadd.s32 %v672, 112
        %v687 = vadd.s32 %v672, 120
        %v688 = vadd.s32 %v672, 128
        %v689 = vadd.s32 %v672, 136
        %v690 = vadd.s32 %v672, 144
        %v691 = vadd.s32 %v672, 152
        %v692 = vadd.s32 %v672, 160
        %v693 = vadd.s32 %v672, 168
        %v694 = vadd.s32 %v672, 176
        %v695 = vadd.s32 %v672, 184
        %v696 = vadd.s32 %v672, 192
        %v697 = vadd.s32 %v672, 200
        %v698 = vadd.s32 %v672, 208
        %v699 = vadd.s32 %v672, 216
        %v700 = vadd.s32 %v672, 224
        %v701 = vadd.s32 %v672, 232
        %v702 = vadd.s32 %v672, 240
        %v703 = vadd.s32 %v672, 248
        %vm704 = vcmp.lt.s32.totalorder %v672, 0
        %v705 = vsub.s32 0, %v672
        %v706 = vsel %vm704, %v705, %v672
        %v707 = vshrl.u32 %v706, 4
        %v708 = vand.u32 %v706, 15
        %v709 = vsub.s32 0, %v708
        %v710 = vsel %vm704, %v709, %v708
        %vm711 = vcmp.lt.s32.totalorder %v673, 0
        %v712 = vsub.s32 0, %v673
        %v713 = vsel %vm711, %v712, %v673
        %v714 = vshrl.u32 %v713, 4
        %v715 = vand.u32 %v713, 15
        %v716 = vsub.s32 0, %v715
        %v717 = vsel %vm711, %v716, %v715
        %vm718 = vcmp.lt.s32.totalorder %v674, 0
        %v719 = vsub.s32 0, %v674
        %v720 = vsel %vm718, %v719, %v674
        %v721 = vshrl.u32 %v720, 4
        %v722 = vand.u32 %v720, 15
        %v723 = vsub.s32 0, %v722
        %v724 = vsel %vm718, %v723, %v722
        %vm725 = vcmp.lt.s32.totalorder %v675, 0
        %v726 = vsub.s32 0, %v675
        %v727 = vsel %vm725, %v726, %v675
        %v728 = vshrl.u32 %v727, 4
        %v729 = vand.u32 %v727, 15
        %v730 = vsub.s32 0, %v729
        %v731 = vsel %vm725, %v730, %v729
        %vm732 = vcmp.lt.s32.totalorder %v676, 0
        %v733 = vsub.s32 0, %v676
        %v734 = vsel %vm732, %v733, %v676
        %v735 = vshrl.u32 %v734, 4
        %v736 = vand.u32 %v734, 15
        %v737 = vsub.s32 0, %v736
        %v738 = vsel %vm732, %v737, %v736
        %vm739 = vcmp.lt.s32.totalorder %v677, 0
        %v740 = vsub.s32 0, %v677
        %v741 = vsel %vm739, %v740, %v677
        %v742 = vshrl.u32 %v741, 4
        %v743 = vand.u32 %v741, 15
        %v744 = vsub.s32 0, %v743
        %v745 = vsel %vm739, %v744, %v743
        %vm746 = vcmp.lt.s32.totalorder %v678, 0
        %v747 = vsub.s32 0, %v678
        %v748 = vsel %vm746, %v747, %v678
        %v749 = vshrl.u32 %v748, 4
        %v750 = vand.u32 %v748, 15
        %v751 = vsub.s32 0, %v750
        %v752 = vsel %vm746, %v751, %v750
        %vm753 = vcmp.lt.s32.totalorder %v679, 0
        %v754 = vsub.s32 0, %v679
        %v755 = vsel %vm753, %v754, %v679
        %v756 = vshrl.u32 %v755, 4
        %v757 = vand.u32 %v755, 15
        %v758 = vsub.s32 0, %v757
        %v759 = vsel %vm753, %v758, %v757
        %vm760 = vcmp.lt.s32.totalorder %v680, 0
        %v761 = vsub.s32 0, %v680
        %v762 = vsel %vm760, %v761, %v680
        %v763 = vshrl.u32 %v762, 4
        %v764 = vand.u32 %v762, 15
        %v765 = vsub.s32 0, %v764
        %v766 = vsel %vm760, %v765, %v764
        %vm767 = vcmp.lt.s32.totalorder %v681, 0
        %v768 = vsub.s32 0, %v681
        %v769 = vsel %vm767, %v768, %v681
        %v770 = vshrl.u32 %v769, 4
        %v771 = vand.u32 %v769, 15
        %v772 = vsub.s32 0, %v771
        %v773 = vsel %vm767, %v772, %v771
        %vm774 = vcmp.lt.s32.totalorder %v682, 0
        %v775 = vsub.s32 0, %v682
        %v776 = vsel %vm774, %v775, %v682
        %v777 = vshrl.u32 %v776, 4
        %v778 = vand.u32 %v776, 15
        %v779 = vsub.s32 0, %v778
        %v780 = vsel %vm774, %v779, %v778
        %vm781 = vcmp.lt.s32.totalorder %v683, 0
        %v782 = vsub.s32 0, %v683
        %v783 = vsel %vm781, %v782, %v683
        %v784 = vshrl.u32 %v783, 4
        %v785 = vand.u32 %v783, 15
        %v786 = vsub.s32 0, %v785
        %v787 = vsel %vm781, %v786, %v785
        %vm788 = vcmp.lt.s32.totalorder %v684, 0
        %v789 = vsub.s32 0, %v684
        %v790 = vsel %vm788, %v789, %v684
        %v791 = vshrl.u32 %v790, 4
        %v792 = vand.u32 %v790, 15
        %v793 = vsub.s32 0, %v792
        %v794 = vsel %vm788, %v793, %v792
        %vm795 = vcmp.lt.s32.totalorder %v685, 0
        %v796 = vsub.s32 0, %v685
        %v797 = vsel %vm795, %v796, %v685
        %v798 = vshrl.u32 %v797, 4
        %v799 = vand.u32 %v797, 15
        %v800 = vsub.s32 0, %v799
        %v801 = vsel %vm795, %v800, %v799
        %vm802 = vcmp.lt.s32.totalorder %v686, 0
        %v803 = vsub.s32 0, %v686
        %v804 = vsel %vm802, %v803, %v686
        %v805 = vshrl.u32 %v804, 4
        %v806 = vand.u32 %v804, 15
        %v807 = vsub.s32 0, %v806
        %v808 = vsel %vm802, %v807, %v806
        %vm809 = vcmp.lt.s32.totalorder %v687, 0
        %v810 = vsub.s32 0, %v687
        %v811 = vsel %vm809, %v810, %v687
        %v812 = vshrl.u32 %v811, 4
        %v813 = vand.u32 %v811, 15
        %v814 = vsub.s32 0, %v813
        %v815 = vsel %vm809, %v814, %v813
        %vm816 = vcmp.lt.s32.totalorder %v688, 0
        %v817 = vsub.s32 0, %v688
        %v818 = vsel %vm816, %v817, %v688
        %v819 = vshrl.u32 %v818, 4
        %v820 = vand.u32 %v818, 15
        %v821 = vsub.s32 0, %v820
        %v822 = vsel %vm816, %v821, %v820
        %vm823 = vcmp.lt.s32.totalorder %v689, 0
        %v824 = vsub.s32 0, %v689
        %v825 = vsel %vm823, %v824, %v689
        %v826 = vshrl.u32 %v825, 4
        %v827 = vand.u32 %v825, 15
        %v828 = vsub.s32 0, %v827
        %v829 = vsel %vm823, %v828, %v827
        %vm830 = vcmp.lt.s32.totalorder %v690, 0
        %v831 = vsub.s32 0, %v690
        %v832 = vsel %vm830, %v831, %v690
        %v833 = vshrl.u32 %v832, 4
        %v834 = vand.u32 %v832, 15
        %v835 = vsub.s32 0, %v834
        %v836 = vsel %vm830, %v835, %v834
        %vm837 = vcmp.lt.s32.totalorder %v691, 0
        %v838 = vsub.s32 0, %v691
        %v839 = vsel %vm837, %v838, %v691
        %v840 = vshrl.u32 %v839, 4
        %v841 = vand.u32 %v839, 15
        %v842 = vsub.s32 0, %v841
        %v843 = vsel %vm837, %v842, %v841
        %vm844 = vcmp.lt.s32.totalorder %v692, 0
        %v845 = vsub.s32 0, %v692
        %v846 = vsel %vm844, %v845, %v692
        %v847 = vshrl.u32 %v846, 4
        %v848 = vand.u32 %v846, 15
        %v849 = vsub.s32 0, %v848
        %v850 = vsel %vm844, %v849, %v848
        %vm851 = vcmp.lt.s32.totalorder %v693, 0
        %v852 = vsub.s32 0, %v693
        %v853 = vsel %vm851, %v852, %v693
        %v854 = vshrl.u32 %v853, 4
        %v855 = vand.u32 %v853, 15
        %v856 = vsub.s32 0, %v855
        %v857 = vsel %vm851, %v856, %v855
        %vm858 = vcmp.lt.s32.totalorder %v694, 0
        %v859 = vsub.s32 0, %v694
        %v860 = vsel %vm858, %v859, %v694
        %v861 = vshrl.u32 %v860, 4
        %v862 = vand.u32 %v860, 15
        %v863 = vsub.s32 0, %v862
        %v864 = vsel %vm858, %v863, %v862
        %vm865 = vcmp.lt.s32.totalorder %v695, 0
        %v866 = vsub.s32 0, %v695
        %v867 = vsel %vm865, %v866, %v695
        %v868 = vshrl.u32 %v867, 4
        %v869 = vand.u32 %v867, 15
        %v870 = vsub.s32 0, %v869
        %v871 = vsel %vm865, %v870, %v869
        %vm872 = vcmp.lt.s32.totalorder %v696, 0
        %v873 = vsub.s32 0, %v696
        %v874 = vsel %vm872, %v873, %v696
        %v875 = vshrl.u32 %v874, 4
        %v876 = vand.u32 %v874, 15
        %v877 = vsub.s32 0, %v876
        %v878 = vsel %vm872, %v877, %v876
        %vm879 = vcmp.lt.s32.totalorder %v697, 0
        %v880 = vsub.s32 0, %v697
        %v881 = vsel %vm879, %v880, %v697
        %v882 = vshrl.u32 %v881, 4
        %v883 = vand.u32 %v881, 15
        %v884 = vsub.s32 0, %v883
        %v885 = vsel %vm879, %v884, %v883
        %vm886 = vcmp.lt.s32.totalorder %v698, 0
        %v887 = vsub.s32 0, %v698
        %v888 = vsel %vm886, %v887, %v698
        %v889 = vshrl.u32 %v888, 4
        %v890 = vand.u32 %v888, 15
        %v891 = vsub.s32 0, %v890
        %v892 = vsel %vm886, %v891, %v890
        %vm893 = vcmp.lt.s32.totalorder %v699, 0
        %v894 = vsub.s32 0, %v699
        %v895 = vsel %vm893, %v894, %v699
        %v896 = vshrl.u32 %v895, 4
        %v897 = vand.u32 %v895, 15
        %v898 = vsub.s32 0, %v897
        %v899 = vsel %vm893, %v898, %v897
        %vm900 = vcmp.lt.s32.totalorder %v700, 0
        %v901 = vsub.s32 0, %v700
        %v902 = vsel %vm900, %v901, %v700
        %v903 = vshrl.u32 %v902, 4
        %v904 = vand.u32 %v902, 15
        %v905 = vsub.s32 0, %v904
        %v906 = vsel %vm900, %v905, %v904
        %vm907 = vcmp.lt.s32.totalorder %v701, 0
        %v908 = vsub.s32 0, %v701
        %v909 = vsel %vm907, %v908, %v701
        %v910 = vshrl.u32 %v909, 4
        %v911 = vand.u32 %v909, 15
        %v912 = vsub.s32 0, %v911
        %v913 = vsel %vm907, %v912, %v911
        %vm914 = vcmp.lt.s32.totalorder %v702, 0
        %v915 = vsub.s32 0, %v702
        %v916 = vsel %vm914, %v915, %v702
        %v917 = vshrl.u32 %v916, 4
        %v918 = vand.u32 %v916, 15
        %v919 = vsub.s32 0, %v918
        %v920 = vsel %vm914, %v919, %v918
        %vm921 = vcmp.lt.s32.totalorder %v703, 0
        %v922 = vsub.s32 0, %v703
        %v923 = vsel %vm921, %v922, %v703
        %v924 = vshrl.u32 %v923, 4
        %v925 = vand.u32 %v923, 15
        %v926 = vsub.s32 0, %v925
        %v927 = vsel %vm921, %v926, %v925
        %vm928 = vcmp.ne.s32.totalorder %v710, 0
        %vm929 = vcmp.ne.s32.totalorder %v717, 0
        %vm930 = vcmp.ne.s32.totalorder %v724, 0
        %vm931 = vcmp.ne.s32.totalorder %v731, 0
        %vm932 = vcmp.ne.s32.totalorder %v738, 0
        %vm933 = vcmp.ne.s32.totalorder %v745, 0
        %vm934 = vcmp.ne.s32.totalorder %v752, 0
        %vm935 = vcmp.ne.s32.totalorder %v759, 0
        %vm936 = vcmp.ne.s32.totalorder %v766, 0
        %vm937 = vcmp.ne.s32.totalorder %v773, 0
        %vm938 = vcmp.ne.s32.totalorder %v780, 0
        %vm939 = vcmp.ne.s32.totalorder %v787, 0
        %vm940 = vcmp.ne.s32.totalorder %v794, 0
        %vm941 = vcmp.ne.s32.totalorder %v801, 0
        %vm942 = vcmp.ne.s32.totalorder %v808, 0
        %vm943 = vcmp.ne.s32.totalorder %v815, 0
        %vm944 = vcmp.ne.s32.totalorder %v822, 0
        %vm945 = vcmp.ne.s32.totalorder %v829, 0
        %vm946 = vcmp.ne.s32.totalorder %v836, 0
        %vm947 = vcmp.ne.s32.totalorder %v843, 0
        %vm948 = vcmp.ne.s32.totalorder %v850, 0
        %vm949 = vcmp.ne.s32.totalorder %v857, 0
        %vm950 = vcmp.ne.s32.totalorder %v864, 0
        %vm951 = vcmp.ne.s32.totalorder %v871, 0
        %vm952 = vcmp.ne.s32.totalorder %v878, 0
        %vm953 = vcmp.ne.s32.totalorder %v885, 0
        %vm954 = vcmp.ne.s32.totalorder %v892, 0
        %vm955 = vcmp.ne.s32.totalorder %v899, 0
        %vm956 = vcmp.ne.s32.totalorder %v906, 0
        %vm957 = vcmp.ne.s32.totalorder %v913, 0
        %vm958 = vcmp.ne.s32.totalorder %v920, 0
        %vm959 = vcmp.ne.s32.totalorder %v927, 0
        %vm960 = vcmp.lt.s32.totalorder %v710, 0
        %vm961 = vcmp.lt.s32.totalorder %v717, 0
        %vm962 = vcmp.lt.s32.totalorder %v724, 0
        %vm963 = vcmp.lt.s32.totalorder %v731, 0
        %vm964 = vcmp.lt.s32.totalorder %v738, 0
        %vm965 = vcmp.lt.s32.totalorder %v745, 0
        %vm966 = vcmp.lt.s32.totalorder %v752, 0
        %vm967 = vcmp.lt.s32.totalorder %v759, 0
        %vm968 = vcmp.lt.s32.totalorder %v766, 0
        %vm969 = vcmp.lt.s32.totalorder %v773, 0
        %vm970 = vcmp.lt.s32.totalorder %v780, 0
        %vm971 = vcmp.lt.s32.totalorder %v787, 0
        %vm972 = vcmp.lt.s32.totalorder %v794, 0
        %vm973 = vcmp.lt.s32.totalorder %v801, 0
        %vm974 = vcmp.lt.s32.totalorder %v808, 0
        %vm975 = vcmp.lt.s32.totalorder %v815, 0
        %vm976 = vcmp.lt.s32.totalorder %v822, 0
        %vm977 = vcmp.lt.s32.totalorder %v829, 0
        %vm978 = vcmp.lt.s32.totalorder %v836, 0
        %vm979 = vcmp.lt.s32.totalorder %v843, 0
        %vm980 = vcmp.lt.s32.totalorder %v850, 0
        %vm981 = vcmp.lt.s32.totalorder %v857, 0
        %vm982 = vcmp.lt.s32.totalorder %v864, 0
        %vm983 = vcmp.lt.s32.totalorder %v871, 0
        %vm984 = vcmp.lt.s32.totalorder %v878, 0
        %vm985 = vcmp.lt.s32.totalorder %v885, 0
        %vm986 = vcmp.lt.s32.totalorder %v892, 0
        %vm987 = vcmp.lt.s32.totalorder %v899, 0
        %vm988 = vcmp.lt.s32.totalorder %v906, 0
        %vm989 = vcmp.lt.s32.totalorder %v913, 0
        %vm990 = vcmp.lt.s32.totalorder %v920, 0
        %vm991 = vcmp.lt.s32.totalorder %v927, 0
        %vm992 = vmand %vm960, %vm928
        %vm993 = vmand %vm961, %vm929
        %vm994 = vmand %vm962, %vm930
        %vm995 = vmand %vm963, %vm931
        %vm996 = vmand %vm964, %vm932
        %vm997 = vmand %vm965, %vm933
        %vm998 = vmand %vm966, %vm934
        %vm999 = vmand %vm967, %vm935
        %vm1000 = vmand %vm968, %vm936
        %vm1001 = vmand %vm969, %vm937
        %vm1002 = vmand %vm970, %vm938
        %vm1003 = vmand %vm971, %vm939
        %vm1004 = vmand %vm972, %vm940
        %vm1005 = vmand %vm973, %vm941
        %vm1006 = vmand %vm974, %vm942
        %vm1007 = vmand %vm975, %vm943
        %vm1008 = vmand %vm976, %vm944
        %vm1009 = vmand %vm977, %vm945
        %vm1010 = vmand %vm978, %vm946
        %vm1011 = vmand %vm979, %vm947
        %vm1012 = vmand %vm980, %vm948
        %vm1013 = vmand %vm981, %vm949
        %vm1014 = vmand %vm982, %vm950
        %vm1015 = vmand %vm983, %vm951
        %vm1016 = vmand %vm984, %vm952
        %vm1017 = vmand %vm985, %vm953
        %vm1018 = vmand %vm986, %vm954
        %vm1019 = vmand %vm987, %vm955
        %vm1020 = vmand %vm988, %vm956
        %vm1021 = vmand %vm989, %vm957
        %vm1022 = vmand %vm990, %vm958
        %vm1023 = vmand %vm991, %vm959
        %v1024 = vadd.s32 %v710, 16
        %v1025 = vadd.s32 %v717, 16
        %v1026 = vadd.s32 %v724, 16
        %v1027 = vadd.s32 %v731, 16
        %v1028 = vadd.s32 %v738, 16
        %v1029 = vadd.s32 %v745, 16
        %v1030 = vadd.s32 %v752, 16
        %v1031 = vadd.s32 %v759, 16
        %v1032 = vadd.s32 %v766, 16
        %v1033 = vadd.s32 %v773, 16
        %v1034 = vadd.s32 %v780, 16
        %v1035 = vadd.s32 %v787, 16
        %v1036 = vadd.s32 %v794, 16
        %v1037 = vadd.s32 %v801, 16
        %v1038 = vadd.s32 %v808, 16
        %v1039 = vadd.s32 %v815, 16
        %v1040 = vadd.s32 %v822, 16
        %v1041 = vadd.s32 %v829, 16
        %v1042 = vadd.s32 %v836, 16
        %v1043 = vadd.s32 %v843, 16
        %v1044 = vadd.s32 %v850, 16
        %v1045 = vadd.s32 %v857, 16
        %v1046 = vadd.s32 %v864, 16
        %v1047 = vadd.s32 %v871, 16
        %v1048 = vadd.s32 %v878, 16
        %v1049 = vadd.s32 %v885, 16
        %v1050 = vadd.s32 %v892, 16
        %v1051 = vadd.s32 %v899, 16
        %v1052 = vadd.s32 %v906, 16
        %v1053 = vadd.s32 %v913, 16
        %v1054 = vadd.s32 %v920, 16
        %v1055 = vadd.s32 %v927, 16
        %v1056 = vsel %vm992, %v1024, %v710
        %v1057 = vsel %vm993, %v1025, %v717
        %v1058 = vsel %vm994, %v1026, %v724
        %v1059 = vsel %vm995, %v1027, %v731
        %v1060 = vsel %vm996, %v1028, %v738
        %v1061 = vsel %vm997, %v1029, %v745
        %v1062 = vsel %vm998, %v1030, %v752
        %v1063 = vsel %vm999, %v1031, %v759
        %v1064 = vsel %vm1000, %v1032, %v766
        %v1065 = vsel %vm1001, %v1033, %v773
        %v1066 = vsel %vm1002, %v1034, %v780
        %v1067 = vsel %vm1003, %v1035, %v787
        %v1068 = vsel %vm1004, %v1036, %v794
        %v1069 = vsel %vm1005, %v1037, %v801
        %v1070 = vsel %vm1006, %v1038, %v808
        %v1071 = vsel %vm1007, %v1039, %v815
        %v1072 = vsel %vm1008, %v1040, %v822
        %v1073 = vsel %vm1009, %v1041, %v829
        %v1074 = vsel %vm1010, %v1042, %v836
        %v1075 = vsel %vm1011, %v1043, %v843
        %v1076 = vsel %vm1012, %v1044, %v850
        %v1077 = vsel %vm1013, %v1045, %v857
        %v1078 = vsel %vm1014, %v1046, %v864
        %v1079 = vsel %vm1015, %v1047, %v871
        %v1080 = vsel %vm1016, %v1048, %v878
        %v1081 = vsel %vm1017, %v1049, %v885
        %v1082 = vsel %vm1018, %v1050, %v892
        %v1083 = vsel %vm1019, %v1051, %v899
        %v1084 = vsel %vm1020, %v1052, %v906
        %v1085 = vsel %vm1021, %v1053, %v913
        %v1086 = vsel %vm1022, %v1054, %v920
        %v1087 = vsel %vm1023, %v1055, %v927
        %vm1088 = vcmp.eq.s32.totalorder %v1056, 0
        %vm1089 = vcmp.eq.s32.totalorder %v1057, 0
        %vm1090 = vcmp.eq.s32.totalorder %v1058, 0
        %vm1091 = vcmp.eq.s32.totalorder %v1059, 0
        %vm1092 = vcmp.eq.s32.totalorder %v1060, 0
        %vm1093 = vcmp.eq.s32.totalorder %v1061, 0
        %vm1094 = vcmp.eq.s32.totalorder %v1062, 0
        %vm1095 = vcmp.eq.s32.totalorder %v1063, 0
        %vm1096 = vcmp.eq.s32.totalorder %v1064, 0
        %vm1097 = vcmp.eq.s32.totalorder %v1065, 0
        %vm1098 = vcmp.eq.s32.totalorder %v1066, 0
        %vm1099 = vcmp.eq.s32.totalorder %v1067, 0
        %vm1100 = vcmp.eq.s32.totalorder %v1068, 0
        %vm1101 = vcmp.eq.s32.totalorder %v1069, 0
        %vm1102 = vcmp.eq.s32.totalorder %v1070, 0
        %vm1103 = vcmp.eq.s32.totalorder %v1071, 0
        %vm1104 = vcmp.eq.s32.totalorder %v1072, 0
        %vm1105 = vcmp.eq.s32.totalorder %v1073, 0
        %vm1106 = vcmp.eq.s32.totalorder %v1074, 0
        %vm1107 = vcmp.eq.s32.totalorder %v1075, 0
        %vm1108 = vcmp.eq.s32.totalorder %v1076, 0
        %vm1109 = vcmp.eq.s32.totalorder %v1077, 0
        %vm1110 = vcmp.eq.s32.totalorder %v1078, 0
        %vm1111 = vcmp.eq.s32.totalorder %v1079, 0
        %vm1112 = vcmp.eq.s32.totalorder %v1080, 0
        %vm1113 = vcmp.eq.s32.totalorder %v1081, 0
        %vm1114 = vcmp.eq.s32.totalorder %v1082, 0
        %vm1115 = vcmp.eq.s32.totalorder %v1083, 0
        %vm1116 = vcmp.eq.s32.totalorder %v1084, 0
        %vm1117 = vcmp.eq.s32.totalorder %v1085, 0
        %vm1118 = vcmp.eq.s32.totalorder %v1086, 0
        %vm1119 = vcmp.eq.s32.totalorder %v1087, 0
        %vm1152 = vcmask 1040384
        %v1153 = vrot.slane %v639, 7
        %v1154 = vrot.slane %v640, 7
        %v1155 = vsel %vm1152, %v1153, %v1154
        %v1156 = vrot.slane %v641, 7
        %v1157 = vsel %vm1152, %v1154, %v1156
        %v1158 = vrot.slane %v642, 7
        %v1159 = vsel %vm1152, %v1156, %v1158
        %v1160 = vrot.slane %v643, 7
        %v1161 = vsel %vm1152, %v1158, %v1160
        %v1162 = vrot.slane %v644, 7
        %v1163 = vsel %vm1152, %v1160, %v1162
        %v1164 = vrot.slane %v645, 7
        %v1165 = vsel %vm1152, %v1162, %v1164
        %v1166 = vrot.slane %v646, 7
        %v1167 = vsel %vm1152, %v1164, %v1166
        %v1168 = vrot.slane %v647, 7
        %v1169 = vsel %vm1152, %v1166, %v1168
        %v1170 = vrot.slane %v648, 7
        %v1171 = vsel %vm1152, %v1168, %v1170
        %v1172 = vrot.slane %v649, 7
        %v1173 = vsel %vm1152, %v1170, %v1172
        %v1174 = vrot.slane %v650, 7
        %v1175 = vsel %vm1152, %v1172, %v1174
        %v1176 = vrot.slane %v651, 7
        %v1177 = vsel %vm1152, %v1174, %v1176
        %v1178 = vrot.slane %v652, 7
        %v1179 = vsel %vm1152, %v1176, %v1178
        %v1180 = vrot.slane %v653, 7
        %v1181 = vsel %vm1152, %v1178, %v1180
        %v1182 = vrot.slane %v654, 7
        %v1183 = vsel %vm1152, %v1180, %v1182
        %v1184 = vrot.slane %v655, 7
        %v1185 = vsel %vm1152, %v1182, %v1184
        %v1186 = vrot.slane %v656, 7
        %v1187 = vsel %vm1152, %v1184, %v1186
        %v1188 = vrot.slane %v657, 7
        %v1189 = vsel %vm1152, %v1186, %v1188
        %v1190 = vrot.slane %v658, 7
        %v1191 = vsel %vm1152, %v1188, %v1190
        %v1192 = vrot.slane %v659, 7
        %v1193 = vsel %vm1152, %v1190, %v1192
        %v1194 = vrot.slane %v660, 7
        %v1195 = vsel %vm1152, %v1192, %v1194
        %v1196 = vrot.slane %v661, 7
        %v1197 = vsel %vm1152, %v1194, %v1196
        %v1198 = vrot.slane %v662, 7
        %v1199 = vsel %vm1152, %v1196, %v1198
        %v1200 = vrot.slane %v663, 7
        %v1201 = vsel %vm1152, %v1198, %v1200
        %v1202 = vrot.slane %v664, 7
        %v1203 = vsel %vm1152, %v1200, %v1202
        %v1204 = vrot.slane %v665, 7
        %v1205 = vsel %vm1152, %v1202, %v1204
        %v1206 = vrot.slane %v666, 7
        %v1207 = vsel %vm1152, %v1204, %v1206
        %v1208 = vrot.slane %v667, 7
        %v1209 = vsel %vm1152, %v1206, %v1208
        %v1210 = vrot.slane %v668, 7
        %v1211 = vsel %vm1152, %v1208, %v1210
        %v1212 = vrot.slane %v669, 7
        %v1213 = vsel %vm1152, %v1210, %v1212
        %v1214 = vrot.slane %v670, 7
        %v1215 = vsel %vm1152, %v1212, %v1214
        %v1248 = vsel %vm1152, 0.0, %v1153
        %v1249 = vsel %vm1088, 1, 0
        %v1250 = vsel %vm1089, 1, 0
        %v1251 = vsel %vm1090, 1, 0
        %v1252 = vsel %vm1091, 1, 0
        %v1253 = vsel %vm1092, 1, 0
        %v1254 = vsel %vm1093, 1, 0
        %v1255 = vsel %vm1094, 1, 0
        %v1256 = vsel %vm1095, 1, 0
        %v1257 = vsel %vm1096, 1, 0
        %v1258 = vsel %vm1097, 1, 0
        %v1259 = vsel %vm1098, 1, 0
        %v1260 = vsel %vm1099, 1, 0
        %v1261 = vsel %vm1100, 1, 0
        %v1262 = vsel %vm1101, 1, 0
        %v1263 = vsel %vm1102, 1, 0
        %v1264 = vsel %vm1103, 1, 0
        %v1265 = vsel %vm1104, 1, 0
        %v1266 = vsel %vm1105, 1, 0
        %v1267 = vsel %vm1106, 1, 0
        %v1268 = vsel %vm1107, 1, 0
        %v1269 = vsel %vm1108, 1, 0
        %v1270 = vsel %vm1109, 1, 0
        %v1271 = vsel %vm1110, 1, 0
        %v1272 = vsel %vm1111, 1, 0
        %v1273 = vsel %vm1112, 1, 0
        %v1274 = vsel %vm1113, 1, 0
        %v1275 = vsel %vm1114, 1, 0
        %v1276 = vsel %vm1115, 1, 0
        %v1277 = vsel %vm1116, 1, 0
        %v1278 = vsel %vm1117, 1, 0
        %v1279 = vsel %vm1118, 1, 0
        %v1280 = vsel %vm1119, 1, 0
        %vm1281 = vcmp.eq.s32.totalorder %v1249, 1
        %vm1282 = vcmp.eq.s32.totalorder %v1250, 1
        %vm1283 = vcmp.eq.s32.totalorder %v1251, 1
        %vm1284 = vcmp.eq.s32.totalorder %v1252, 1
        %vm1285 = vcmp.eq.s32.totalorder %v1253, 1
        %vm1286 = vcmp.eq.s32.totalorder %v1254, 1
        %vm1287 = vcmp.eq.s32.totalorder %v1255, 1
        %vm1288 = vcmp.eq.s32.totalorder %v1256, 1
        %vm1289 = vcmp.eq.s32.totalorder %v1257, 1
        %vm1290 = vcmp.eq.s32.totalorder %v1258, 1
        %vm1291 = vcmp.eq.s32.totalorder %v1259, 1
        %vm1292 = vcmp.eq.s32.totalorder %v1260, 1
        %vm1293 = vcmp.eq.s32.totalorder %v1261, 1
        %vm1294 = vcmp.eq.s32.totalorder %v1262, 1
        %vm1295 = vcmp.eq.s32.totalorder %v1263, 1
        %vm1296 = vcmp.eq.s32.totalorder %v1264, 1
        %vm1297 = vcmp.eq.s32.totalorder %v1265, 1
        %vm1298 = vcmp.eq.s32.totalorder %v1266, 1
        %vm1299 = vcmp.eq.s32.totalorder %v1267, 1
        %vm1300 = vcmp.eq.s32.totalorder %v1268, 1
        %vm1301 = vcmp.eq.s32.totalorder %v1269, 1
        %vm1302 = vcmp.eq.s32.totalorder %v1270, 1
        %vm1303 = vcmp.eq.s32.totalorder %v1271, 1
        %vm1304 = vcmp.eq.s32.totalorder %v1272, 1
        %vm1305 = vcmp.eq.s32.totalorder %v1273, 1
        %vm1306 = vcmp.eq.s32.totalorder %v1274, 1
        %vm1307 = vcmp.eq.s32.totalorder %v1275, 1
        %vm1308 = vcmp.eq.s32.totalorder %v1276, 1
        %vm1309 = vcmp.eq.s32.totalorder %v1277, 1
        %vm1310 = vcmp.eq.s32.totalorder %v1278, 1
        %vm1311 = vcmp.eq.s32.totalorder %v1279, 1
        %vm1312 = vcmp.eq.s32.totalorder %v1280, 1
        %v1313 = vsel %vm1281, 0.0, %v1248
        %v1314 = vsel %vm1282, 0.0, %v1155
        %v1315 = vsel %vm1283, 0.0, %v1157
        %v1316 = vsel %vm1284, 0.0, %v1159
        %v1317 = vsel %vm1285, 0.0, %v1161
        %v1318 = vsel %vm1286, 0.0, %v1163
        %v1319 = vsel %vm1287, 0.0, %v1165
        %v1320 = vsel %vm1288, 0.0, %v1167
        %v1321 = vsel %vm1289, 0.0, %v1169
        %v1322 = vsel %vm1290, 0.0, %v1171
        %v1323 = vsel %vm1291, 0.0, %v1173
        %v1324 = vsel %vm1292, 0.0, %v1175
        %v1325 = vsel %vm1293, 0.0, %v1177
        %v1326 = vsel %vm1294, 0.0, %v1179
        %v1327 = vsel %vm1295, 0.0, %v1181
        %v1328 = vsel %vm1296, 0.0, %v1183
        %v1329 = vsel %vm1297, 0.0, %v1185
        %v1330 = vsel %vm1298, 0.0, %v1187
        %v1331 = vsel %vm1299, 0.0, %v1189
        %v1332 = vsel %vm1300, 0.0, %v1191
        %v1333 = vsel %vm1301, 0.0, %v1193
        %v1334 = vsel %vm1302, 0.0, %v1195
        %v1335 = vsel %vm1303, 0.0, %v1197
        %v1336 = vsel %vm1304, 0.0, %v1199
        %v1337 = vsel %vm1305, 0.0, %v1201
        %v1338 = vsel %vm1306, 0.0, %v1203
        %v1339 = vsel %vm1307, 0.0, %v1205
        %v1340 = vsel %vm1308, 0.0, %v1207
        %v1341 = vsel %vm1309, 0.0, %v1209
        %v1342 = vsel %vm1310, 0.0, %v1211
        %v1343 = vsel %vm1311, 0.0, %v1213
        %v1344 = vsel %vm1312, 0.0, %v1215
        %vm1345 = vcmp.eq.s32.totalorder %v1056, 15
        %vm1346 = vcmp.eq.s32.totalorder %v1057, 15
        %vm1347 = vcmp.eq.s32.totalorder %v1058, 15
        %vm1348 = vcmp.eq.s32.totalorder %v1059, 15
        %vm1349 = vcmp.eq.s32.totalorder %v1060, 15
        %vm1350 = vcmp.eq.s32.totalorder %v1061, 15
        %vm1351 = vcmp.eq.s32.totalorder %v1062, 15
        %vm1352 = vcmp.eq.s32.totalorder %v1063, 15
        %vm1353 = vcmp.eq.s32.totalorder %v1064, 15
        %vm1354 = vcmp.eq.s32.totalorder %v1065, 15
        %vm1355 = vcmp.eq.s32.totalorder %v1066, 15
        %vm1356 = vcmp.eq.s32.totalorder %v1067, 15
        %vm1357 = vcmp.eq.s32.totalorder %v1068, 15
        %vm1358 = vcmp.eq.s32.totalorder %v1069, 15
        %vm1359 = vcmp.eq.s32.totalorder %v1070, 15
        %vm1360 = vcmp.eq.s32.totalorder %v1071, 15
        %vm1361 = vcmp.eq.s32.totalorder %v1072, 15
        %vm1362 = vcmp.eq.s32.totalorder %v1073, 15
        %vm1363 = vcmp.eq.s32.totalorder %v1074, 15
        %vm1364 = vcmp.eq.s32.totalorder %v1075, 15
        %vm1365 = vcmp.eq.s32.totalorder %v1076, 15
        %vm1366 = vcmp.eq.s32.totalorder %v1077, 15
        %vm1367 = vcmp.eq.s32.totalorder %v1078, 15
        %vm1368 = vcmp.eq.s32.totalorder %v1079, 15
        %vm1369 = vcmp.eq.s32.totalorder %v1080, 15
        %vm1370 = vcmp.eq.s32.totalorder %v1081, 15
        %vm1371 = vcmp.eq.s32.totalorder %v1082, 15
        %vm1372 = vcmp.eq.s32.totalorder %v1083, 15
        %vm1373 = vcmp.eq.s32.totalorder %v1084, 15
        %vm1374 = vcmp.eq.s32.totalorder %v1085, 15
        %vm1375 = vcmp.eq.s32.totalorder %v1086, 15
        %vm1376 = vcmp.eq.s32.totalorder %v1087, 15
        %vm1377 = vcmask 1046528
        %v1378 = vrot.slane %v639, 1
        %v1379 = vrot.slane %v640, 1
        %v1380 = vsel %vm1377, %v1378, %v1379
        %v1381 = vrot.slane %v641, 1
        %v1382 = vsel %vm1377, %v1379, %v1381
        %v1383 = vrot.slane %v642, 1
        %v1384 = vsel %vm1377, %v1381, %v1383
        %v1385 = vrot.slane %v643, 1
        %v1386 = vsel %vm1377, %v1383, %v1385
        %v1387 = vrot.slane %v644, 1
        %v1388 = vsel %vm1377, %v1385, %v1387
        %v1389 = vrot.slane %v645, 1
        %v1390 = vsel %vm1377, %v1387, %v1389
        %v1391 = vrot.slane %v646, 1
        %v1392 = vsel %vm1377, %v1389, %v1391
        %v1393 = vrot.slane %v647, 1
        %v1394 = vsel %vm1377, %v1391, %v1393
        %v1395 = vrot.slane %v648, 1
        %v1396 = vsel %vm1377, %v1393, %v1395
        %v1397 = vrot.slane %v649, 1
        %v1398 = vsel %vm1377, %v1395, %v1397
        %v1399 = vrot.slane %v650, 1
        %v1400 = vsel %vm1377, %v1397, %v1399
        %v1401 = vrot.slane %v651, 1
        %v1402 = vsel %vm1377, %v1399, %v1401
        %v1403 = vrot.slane %v652, 1
        %v1404 = vsel %vm1377, %v1401, %v1403
        %v1405 = vrot.slane %v653, 1
        %v1406 = vsel %vm1377, %v1403, %v1405
        %v1407 = vrot.slane %v654, 1
        %v1408 = vsel %vm1377, %v1405, %v1407
        %v1409 = vrot.slane %v655, 1
        %v1410 = vsel %vm1377, %v1407, %v1409
        %v1411 = vrot.slane %v656, 1
        %v1412 = vsel %vm1377, %v1409, %v1411
        %v1413 = vrot.slane %v657, 1
        %v1414 = vsel %vm1377, %v1411, %v1413
        %v1415 = vrot.slane %v658, 1
        %v1416 = vsel %vm1377, %v1413, %v1415
        %v1417 = vrot.slane %v659, 1
        %v1418 = vsel %vm1377, %v1415, %v1417
        %v1419 = vrot.slane %v660, 1
        %v1420 = vsel %vm1377, %v1417, %v1419
        %v1421 = vrot.slane %v661, 1
        %v1422 = vsel %vm1377, %v1419, %v1421
        %v1423 = vrot.slane %v662, 1
        %v1424 = vsel %vm1377, %v1421, %v1423
        %v1425 = vrot.slane %v663, 1
        %v1426 = vsel %vm1377, %v1423, %v1425
        %v1427 = vrot.slane %v664, 1
        %v1428 = vsel %vm1377, %v1425, %v1427
        %v1429 = vrot.slane %v665, 1
        %v1430 = vsel %vm1377, %v1427, %v1429
        %v1431 = vrot.slane %v666, 1
        %v1432 = vsel %vm1377, %v1429, %v1431
        %v1433 = vrot.slane %v667, 1
        %v1434 = vsel %vm1377, %v1431, %v1433
        %v1435 = vrot.slane %v668, 1
        %v1436 = vsel %vm1377, %v1433, %v1435
        %v1437 = vrot.slane %v669, 1
        %v1438 = vsel %vm1377, %v1435, %v1437
        %v1439 = vrot.slane %v670, 1
        %v1440 = vsel %vm1377, %v1437, %v1439
        %v1473 = vsel %vm1377, %v1439, 0.0
        %v1474 = vsel %vm1345, 1, 0
        %v1475 = vsel %vm1346, 1, 0
        %v1476 = vsel %vm1347, 1, 0
        %v1477 = vsel %vm1348, 1, 0
        %v1478 = vsel %vm1349, 1, 0
        %v1479 = vsel %vm1350, 1, 0
        %v1480 = vsel %vm1351, 1, 0
        %v1481 = vsel %vm1352, 1, 0
        %v1482 = vsel %vm1353, 1, 0
        %v1483 = vsel %vm1354, 1, 0
        %v1484 = vsel %vm1355, 1, 0
        %v1485 = vsel %vm1356, 1, 0
        %v1486 = vsel %vm1357, 1, 0
        %v1487 = vsel %vm1358, 1, 0
        %v1488 = vsel %vm1359, 1, 0
        %v1489 = vsel %vm1360, 1, 0
        %v1490 = vsel %vm1361, 1, 0
        %v1491 = vsel %vm1362, 1, 0
        %v1492 = vsel %vm1363, 1, 0
        %v1493 = vsel %vm1364, 1, 0
        %v1494 = vsel %vm1365, 1, 0
        %v1495 = vsel %vm1366, 1, 0
        %v1496 = vsel %vm1367, 1, 0
        %v1497 = vsel %vm1368, 1, 0
        %v1498 = vsel %vm1369, 1, 0
        %v1499 = vsel %vm1370, 1, 0
        %v1500 = vsel %vm1371, 1, 0
        %v1501 = vsel %vm1372, 1, 0
        %v1502 = vsel %vm1373, 1, 0
        %v1503 = vsel %vm1374, 1, 0
        %v1504 = vsel %vm1375, 1, 0
        %v1505 = vsel %vm1376, 1, 0
        %vm1506 = vcmp.eq.s32.totalorder %v1474, 1
        %vm1507 = vcmp.eq.s32.totalorder %v1475, 1
        %vm1508 = vcmp.eq.s32.totalorder %v1476, 1
        %vm1509 = vcmp.eq.s32.totalorder %v1477, 1
        %vm1510 = vcmp.eq.s32.totalorder %v1478, 1
        %vm1511 = vcmp.eq.s32.totalorder %v1479, 1
        %vm1512 = vcmp.eq.s32.totalorder %v1480, 1
        %vm1513 = vcmp.eq.s32.totalorder %v1481, 1
        %vm1514 = vcmp.eq.s32.totalorder %v1482, 1
        %vm1515 = vcmp.eq.s32.totalorder %v1483, 1
        %vm1516 = vcmp.eq.s32.totalorder %v1484, 1
        %vm1517 = vcmp.eq.s32.totalorder %v1485, 1
        %vm1518 = vcmp.eq.s32.totalorder %v1486, 1
        %vm1519 = vcmp.eq.s32.totalorder %v1487, 1
        %vm1520 = vcmp.eq.s32.totalorder %v1488, 1
        %vm1521 = vcmp.eq.s32.totalorder %v1489, 1
        %vm1522 = vcmp.eq.s32.totalorder %v1490, 1
        %vm1523 = vcmp.eq.s32.totalorder %v1491, 1
        %vm1524 = vcmp.eq.s32.totalorder %v1492, 1
        %vm1525 = vcmp.eq.s32.totalorder %v1493, 1
        %vm1526 = vcmp.eq.s32.totalorder %v1494, 1
        %vm1527 = vcmp.eq.s32.totalorder %v1495, 1
        %vm1528 = vcmp.eq.s32.totalorder %v1496, 1
        %vm1529 = vcmp.eq.s32.totalorder %v1497, 1
        %vm1530 = vcmp.eq.s32.totalorder %v1498, 1
        %vm1531 = vcmp.eq.s32.totalorder %v1499, 1
        %vm1532 = vcmp.eq.s32.totalorder %v1500, 1
        %vm1533 = vcmp.eq.s32.totalorder %v1501, 1
        %vm1534 = vcmp.eq.s32.totalorder %v1502, 1
        %vm1535 = vcmp.eq.s32.totalorder %v1503, 1
        %vm1536 = vcmp.eq.s32.totalorder %v1504, 1
        %vm1537 = vcmp.eq.s32.totalorder %v1505, 1
        %v1538 = vsel %vm1506, 0.0, %v1380
        %v1539 = vsel %vm1507, 0.0, %v1382
        %v1540 = vsel %vm1508, 0.0, %v1384
        %v1541 = vsel %vm1509, 0.0, %v1386
        %v1542 = vsel %vm1510, 0.0, %v1388
        %v1543 = vsel %vm1511, 0.0, %v1390
        %v1544 = vsel %vm1512, 0.0, %v1392
        %v1545 = vsel %vm1513, 0.0, %v1394
        %v1546 = vsel %vm1514, 0.0, %v1396
        %v1547 = vsel %vm1515, 0.0, %v1398
        %v1548 = vsel %vm1516, 0.0, %v1400
        %v1549 = vsel %vm1517, 0.0, %v1402
        %v1550 = vsel %vm1518, 0.0, %v1404
        %v1551 = vsel %vm1519, 0.0, %v1406
        %v1552 = vsel %vm1520, 0.0, %v1408
        %v1553 = vsel %vm1521, 0.0, %v1410
        %v1554 = vsel %vm1522, 0.0, %v1412
        %v1555 = vsel %vm1523, 0.0, %v1414
        %v1556 = vsel %vm1524, 0.0, %v1416
        %v1557 = vsel %vm1525, 0.0, %v1418
        %v1558 = vsel %vm1526, 0.0, %v1420
        %v1559 = vsel %vm1527, 0.0, %v1422
        %v1560 = vsel %vm1528, 0.0, %v1424
        %v1561 = vsel %vm1529, 0.0, %v1426
        %v1562 = vsel %vm1530, 0.0, %v1428
        %v1563 = vsel %vm1531, 0.0, %v1430
        %v1564 = vsel %vm1532, 0.0, %v1432
        %v1565 = vsel %vm1533, 0.0, %v1434
        %v1566 = vsel %vm1534, 0.0, %v1436
        %v1567 = vsel %vm1535, 0.0, %v1438
        %v1568 = vsel %vm1536, 0.0, %v1440
        %v1569 = vsel %vm1537, 0.0, %v1473
        %1570 = vrot.lane.b32.xlu0 %v639, 64
        %v1571 = vpop.permute.xlu0 %1570
        %1572 = vrot.lane.b32.xlu0 %v640, 64
        %v1573 = vpop.permute.xlu0 %1572
        %1574 = vrot.lane.b32.xlu0 %v641, 64
        %v1575 = vpop.permute.xlu0 %1574
        %1576 = vrot.lane.b32.xlu0 %v642, 64
        %v1577 = vpop.permute.xlu0 %1576
        %1578 = vrot.lane.b32.xlu0 %v643, 64
        %v1579 = vpop.permute.xlu0 %1578
        %1580 = vrot.lane.b32.xlu0 %v644, 64
        %v1581 = vpop.permute.xlu0 %1580
        %1582 = vrot.lane.b32.xlu0 %v645, 64
        %v1583 = vpop.permute.xlu0 %1582
        %1584 = vrot.lane.b32.xlu0 %v646, 64
        %v1585 = vpop.permute.xlu0 %1584
        %1586 = vrot.lane.b32.xlu0 %v647, 64
        %v1587 = vpop.permute.xlu0 %1586
        %1588 = vrot.lane.b32.xlu0 %v648, 64
        %v1589 = vpop.permute.xlu0 %1588
        %1590 = vrot.lane.b32.xlu0 %v649, 64
        %v1591 = vpop.permute.xlu0 %1590
        %1592 = vrot.lane.b32.xlu0 %v650, 64
        %v1593 = vpop.permute.xlu0 %1592
        %1594 = vrot.lane.b32.xlu0 %v651, 64
        %v1595 = vpop.permute.xlu0 %1594
        %1596 = vrot.lane.b32.xlu0 %v652, 64
        %v1597 = vpop.permute.xlu0 %1596
        %1598 = vrot.lane.b32.xlu0 %v653, 64
        %v1599 = vpop.permute.xlu0 %1598
        %1600 = vrot.lane.b32.xlu0 %v654, 64
        %v1601 = vpop.permute.xlu0 %1600
        %1602 = vrot.lane.b32.xlu0 %v655, 64
        %v1603 = vpop.permute.xlu0 %1602
        %1604 = vrot.lane.b32.xlu0 %v656, 64
        %v1605 = vpop.permute.xlu0 %1604
        %1606 = vrot.lane.b32.xlu0 %v657, 64
        %v1607 = vpop.permute.xlu0 %1606
        %1608 = vrot.lane.b32.xlu0 %v658, 64
        %v1609 = vpop.permute.xlu0 %1608
        %1610 = vrot.lane.b32.xlu0 %v659, 64
        %v1611 = vpop.permute.xlu0 %1610
        %1612 = vrot.lane.b32.xlu0 %v660, 64
        %v1613 = vpop.permute.xlu0 %1612
        %1614 = vrot.lane.b32.xlu0 %v661, 64
        %v1615 = vpop.permute.xlu0 %1614
        %1616 = vrot.lane.b32.xlu0 %v662, 64
        %v1617 = vpop.permute.xlu0 %1616
        %1618 = vrot.lane.b32.xlu0 %v663, 64
        %v1619 = vpop.permute.xlu0 %1618
        %1620 = vrot.lane.b32.xlu0 %v664, 64
        %v1621 = vpop.permute.xlu0 %1620
        %1622 = vrot.lane.b32.xlu0 %v665, 64
        %v1623 = vpop.permute.xlu0 %1622
        %1624 = vrot.lane.b32.xlu0 %v666, 64
        %v1625 = vpop.permute.xlu0 %1624
        %1626 = vrot.lane.b32.xlu0 %v667, 64
        %v1627 = vpop.permute.xlu0 %1626
        %1628 = vrot.lane.b32.xlu0 %v668, 64
        %v1629 = vpop.permute.xlu0 %1628
        %1630 = vrot.lane.b32.xlu0 %v669, 64
        %v1631 = vpop.permute.xlu0 %1630
        %1632 = vrot.lane.b32.xlu0 %v670, 64
        %v1633 = vpop.permute.xlu0 %1632
        %v1666 = vsel %vm429, %v1313, %v1571
        %v1667 = vsel %vm429, %v1314, %v1573
        %v1668 = vsel %vm429, %v1315, %v1575
        %v1669 = vsel %vm429, %v1316, %v1577
        %v1670 = vsel %vm429, %v1317, %v1579
        %v1671 = vsel %vm429, %v1318, %v1581
        %v1672 = vsel %vm429, %v1319, %v1583
        %v1673 = vsel %vm429, %v1320, %v1585
        %v1674 = vsel %vm429, %v1321, %v1587
        %v1675 = vsel %vm429, %v1322, %v1589
        %v1676 = vsel %vm429, %v1323, %v1591
        %v1677 = vsel %vm429, %v1324, %v1593
        %v1678 = vsel %vm429, %v1325, %v1595
        %v1679 = vsel %vm429, %v1326, %v1597
        %v1680 = vsel %vm429, %v1327, %v1599
        %v1681 = vsel %vm429, %v1328, %v1601
        %v1682 = vsel %vm429, %v1329, %v1603
        %v1683 = vsel %vm429, %v1330, %v1605
        %v1684 = vsel %vm429, %v1331, %v1607
        %v1685 = vsel %vm429, %v1332, %v1609
        %v1686 = vsel %vm429, %v1333, %v1611
        %v1687 = vsel %vm429, %v1334, %v1613
        %v1688 = vsel %vm429, %v1335, %v1615
        %v1689 = vsel %vm429, %v1336, %v1617
        %v1690 = vsel %vm429, %v1337, %v1619
        %v1691 = vsel %vm429, %v1338, %v1621
        %v1692 = vsel %vm429, %v1339, %v1623
        %v1693 = vsel %vm429, %v1340, %v1625
        %v1694 = vsel %vm429, %v1341, %v1627
        %v1695 = vsel %vm429, %v1342, %v1629
        %v1696 = vsel %vm429, %v1343, %v1631
        %v1697 = vsel %vm429, %v1344, %v1633
        %v1698 = vpack.c.bf16 %v1667, %v1666
        %v1699 = vpack.c.bf16 %v1539, %v1538
        %v1700 = vpack.c.bf16 %v1669, %v1668
        %v1701 = vpack.c.bf16 %v1541, %v1540
        %v1702 = vpack.c.bf16 %v1671, %v1670
        %v1703 = vpack.c.bf16 %v1543, %v1542
        %v1704 = vpack.c.bf16 %v1673, %v1672
        %v1705 = vpack.c.bf16 %v1545, %v1544
        %v1706 = vpack.c.bf16 %v1675, %v1674
        %v1707 = vpack.c.bf16 %v1547, %v1546
        %v1708 = vpack.c.bf16 %v1677, %v1676
        %v1709 = vpack.c.bf16 %v1549, %v1548
        %v1710 = vpack.c.bf16 %v1679, %v1678
        %v1711 = vpack.c.bf16 %v1551, %v1550
        %v1712 = vpack.c.bf16 %v1681, %v1680
        %v1713 = vpack.c.bf16 %v1553, %v1552
        %v1714 = vpack.c.bf16 %v1683, %v1682
        %v1715 = vpack.c.bf16 %v1555, %v1554
        %v1716 = vpack.c.bf16 %v1685, %v1684
        %v1717 = vpack.c.bf16 %v1557, %v1556
        %v1718 = vpack.c.bf16 %v1687, %v1686
        %v1719 = vpack.c.bf16 %v1559, %v1558
        %v1720 = vpack.c.bf16 %v1689, %v1688
        %v1721 = vpack.c.bf16 %v1561, %v1560
        %v1722 = vpack.c.bf16 %v1691, %v1690
        %v1723 = vpack.c.bf16 %v1563, %v1562
        %v1724 = vpack.c.bf16 %v1693, %v1692
        %v1725 = vpack.c.bf16 %v1565, %v1564
        %v1726 = vpack.c.bf16 %v1695, %v1694
        %v1727 = vpack.c.bf16 %v1567, %v1566
        %v1728 = vpack.c.bf16 %v1697, %v1696
        %v1729 = vpack.c.bf16 %v1569, %v1568
        %v1730 = vld [vmem:[%s3] sm:$0xf]
        %v1731 = vld [vmem:[%s3 + $0x4] sm:$0xf]
        %v1732 = vld [vmem:[%s3 + $0x8] sm:$0xf]
        %v1733 = vld [vmem:[%s3 + $0xc] sm:$0xf]
        %v1734 = vld [vmem:[%s3 + $0x10] sm:$0xf]
        %v1735 = vld [vmem:[%s3 + $0x14] sm:$0xf]
        %v1736 = vld [vmem:[%s3 + $0x18] sm:$0xf]
        %v1737 = vld [vmem:[%s3 + $0x1c] sm:$0xf]
        %v1738 = vld [vmem:[%s3 + $0x20] sm:$0xf]
        %v1739 = vld [vmem:[%s3 + $0x24] sm:$0xf]
        %v1740 = vld [vmem:[%s3 + $0x28] sm:$0xf]
        %v1741 = vld [vmem:[%s3 + $0x2c] sm:$0xf]
        %v1742 = vld [vmem:[%s3 + $0x30] sm:$0xf]
        %v1743 = vld [vmem:[%s3 + $0x34] sm:$0xf]
        %v1744 = vld [vmem:[%s3 + $0x38] sm:$0xf]
        %v1745 = vld [vmem:[%s3 + $0x3c] sm:$0xf]
        %v1746 = vld [vmem:[%s3 + $0x40] sm:$0xf]
        %v1747 = vld [vmem:[%s3 + $0x44] sm:$0xf]
        %v1748 = vld [vmem:[%s3 + $0x48] sm:$0xf]
        %v1749 = vld [vmem:[%s3 + $0x4c] sm:$0xf]
        %v1750 = vld [vmem:[%s3 + $0x50] sm:$0xf]
        %v1751 = vld [vmem:[%s3 + $0x54] sm:$0xf]
        %v1752 = vld [vmem:[%s3 + $0x58] sm:$0xf]
        %v1753 = vld [vmem:[%s3 + $0x5c] sm:$0xf]
        %s1754 = scalar_lea.vmem %s3, 96
        %v1755 = vld [vmem:[%s1754] sm:$0xf]
        %v1756 = vld [vmem:[%s1754 + $0x4] sm:$0xf]
        %v1757 = vld [vmem:[%s1754 + $0x8] sm:$0xf]
        %v1758 = vld [vmem:[%s1754 + $0xc] sm:$0xf]
        %v1759 = vld [vmem:[%s1754 + $0x10] sm:$0xf]
        %v1760 = vld [vmem:[%s1754 + $0x14] sm:$0xf]
        %v1761 = vld [vmem:[%s1754 + $0x18] sm:$0xf]
        %v1762 = vld [vmem:[%s1754 + $0x1c] sm:$0xf]
        %v1763 = vld [vmem:[%s1754 + $0x20] sm:$0xf]
        %v1764 = vld [vmem:[%s1754 + $0x24] sm:$0xf]
        %v1765 = vld [vmem:[%s1754 + $0x28] sm:$0xf]
        %v1766 = vld [vmem:[%s1754 + $0x2c] sm:$0xf]
        %v1767 = vld [vmem:[%s1754 + $0x30] sm:$0xf]
        %v1768 = vld [vmem:[%s1754 + $0x34] sm:$0xf]
        %v1769 = vld [vmem:[%s1754 + $0x38] sm:$0xf]
        %v1770 = vld [vmem:[%s1754 + $0x3c] sm:$0xf]
        %v1771 = vld [vmem:[%s1754 + $0x40] sm:$0xf]
        %v1772 = vld [vmem:[%s1754 + $0x44] sm:$0xf]
        %v1773 = vld [vmem:[%s1754 + $0x48] sm:$0xf]
        %v1774 = vld [vmem:[%s1754 + $0x4c] sm:$0xf]
        %v1775 = vld [vmem:[%s1754 + $0x50] sm:$0xf]
        %v1776 = vld [vmem:[%s1754 + $0x54] sm:$0xf]
        %v1777 = vld [vmem:[%s1754 + $0x58] sm:$0xf]
        %v1778 = vld [vmem:[%s1754 + $0x5c] sm:$0xf]
        %v1803 = vunpack.c.l.b16 %v1755
        %v1804 = vunpack.c.l.b16 %v1756
        %v1805 = vunpack.c.l.b16 %v1757
        %v1806 = vunpack.c.l.b16 %v1758
        %v1807 = vunpack.c.l.b16 %v1759
        %v1808 = vunpack.c.l.b16 %v1760
        %v1809 = vunpack.c.l.b16 %v1761
        %v1810 = vunpack.c.l.b16 %v1762
        %v1811 = vunpack.c.l.b16 %v1763
        %v1812 = vunpack.c.l.b16 %v1764
        %v1813 = vunpack.c.l.b16 %v1765
        %v1814 = vunpack.c.l.b16 %v1766
        %v1815 = vunpack.c.l.b16 %v1767
        %v1816 = vunpack.c.l.b16 %v1768
        %v1817 = vunpack.c.l.b16 %v1769
        %v1818 = vunpack.c.l.b16 %v1770
        %v1819 = vunpack.c.l.b16 %v1771
        %v1820 = vunpack.c.l.b16 %v1772
        %v1821 = vunpack.c.l.b16 %v1773
        %v1822 = vunpack.c.l.b16 %v1774
        %v1823 = vunpack.c.l.b16 %v1775
        %v1824 = vunpack.c.l.b16 %v1776
        %v1825 = vunpack.c.l.b16 %v1777
        %v1826 = vunpack.c.l.b16 %v1778
        %v1827 = vpack.c.b16 %v1804, %v1803
        %v1828 = vpack.c.b16 %v1806, %v1805
        %v1829 = vpack.c.b16 %v1808, %v1807
        %v1830 = vpack.c.b16 %v1810, %v1809
        %v1831 = vpack.c.b16 %v1812, %v1811
        %v1832 = vpack.c.b16 %v1814, %v1813
        %v1833 = vpack.c.b16 %v1816, %v1815
        %v1834 = vpack.c.b16 %v1818, %v1817
        %v1835 = vpack.c.b16 %v1820, %v1819
        %v1836 = vpack.c.b16 %v1822, %v1821
        %v1837 = vpack.c.b16 %v1824, %v1823
        %v1838 = vpack.c.b16 %v1826, %v1825
        %v1852 = vsel %vm429, %v1699, 0
        %v1855 = vsel %vm429, %v1701, 0
        %v1858 = vsel %vm429, %v1703, 0
        %v1861 = vsel %vm429, %v1705, 0
        %v1864 = vsel %vm429, %v1707, 0
        %v1867 = vsel %vm429, %v1709, 0
        %v1870 = vsel %vm429, %v1711, 0
        %v1873 = vsel %vm429, %v1713, 0
        %v1876 = vsel %vm429, %v1715, 0
        %v1879 = vsel %vm429, %v1717, 0
        %v1882 = vsel %vm429, %v1719, 0
        %v1885 = vsel %vm429, %v1721, 0
        %v1888 = vsel %vm429, %v1723, 0
        %v1891 = vsel %vm429, %v1725, 0
        %v1894 = vsel %vm429, %v1727, 0
        %v1897 = vsel %vm429, %v1729, 0
        %1899 = vmatprep.subr.bf16.mxu0 0
        %1900 = vmatpush1.bf16.msra.mxu0 %v1827
        %1901 = vmatprep.subr.bf16.mxu0 0
        %1902 = vmatpush1.bf16.msra.mxu0 %v1828
        %1903 = vmatprep.subr.bf16.mxu0 0
        %1904 = vmatpush1.bf16.msra.mxu0 %v1829
        %1905 = vmatprep.subr.bf16.mxu0 0
        %1906 = vmatpush1.bf16.msra.mxu0 %v1830
        %1907 = vmatprep.subr.bf16.mxu0 0
        %1908 = vmatpush1.bf16.msra.mxu0 %v1831
        %1909 = vmatprep.subr.bf16.mxu0 0
        %1910 = vmatpush1.bf16.msra.mxu0 %v1832
        %1911 = vmatprep.subr.bf16.mxu0 0
        %1912 = vmatpush1.bf16.msra.mxu0 %v1833
        %1913 = vmatprep.subr.bf16.mxu0 0
        %1914 = vmatpush1.bf16.msra.mxu0 %v1834
        %1915 = vmatprep.subr.bf16.mxu0 0
        %1916 = vmatpush1.bf16.msra.mxu0 %v1835
        %1917 = vmatprep.subr.bf16.mxu0 0
        %1918 = vmatpush1.bf16.msra.mxu0 %v1836
        %1919 = vmatprep.subr.bf16.mxu0 0
        %1920 = vmatpush1.bf16.msra.mxu0 %v1837
        %1921 = vmatprep.subr.bf16.mxu0 0
        %1922 = vmatpush1.bf16.msra.mxu0 %v1838
        %1923 = vmatprep.subr.bf16.mxu0 0
        %1924 = vmatpush1.bf16.msra.mxu0 0
        %1925 = vmatprep.subr.bf16.mxu0 0
        %1926 = vmatpush1.bf16.msra.mxu0 0
        %1927 = vmatprep.subr.bf16.mxu0 0
        %1928 = vmatpush1.bf16.msra.mxu0 0
        %1929 = vmatprep.subr.bf16.mxu0 0
        %1930 = vmatpush1.bf16.msra.mxu0 0
        %1931 = vmatprep.mubr.bf16.mxu0 %v1852
        %1932 = vmatmul.mubr.bf16.gmra.mrb[0].mxu0 %v1698
        %v1933 = vpop.f32.mrb[0].mxu0
        %v1934 = vadd.f32 0.0, %v1933
        %v1935 = vpop.f32.mrb[0].mxu0
        %v1936 = vpop.f32.mrb[0].mxu0
        %v1937 = vadd.f32 0.0, %v1936
        %v1938 = vpop.f32.mrb[0].mxu0
        %1939 = vmatprep.mubr.bf16.mxu0 %v1855
        %1940 = vmatmul.mubr.bf16.gmra.mrb[0].mxu0 %v1700
        %v1941 = vpop.f32.mrb[0].mxu0
        %v1942 = vadd.f32 0.0, %v1941
        %v1943 = vpop.f32.mrb[0].mxu0
        %v1944 = vpop.f32.mrb[0].mxu0
        %v1945 = vadd.f32 0.0, %v1944
        %v1946 = vpop.f32.mrb[0].mxu0
        %1947 = vmatprep.mubr.bf16.mxu0 %v1858
        %1948 = vmatmul.mubr.bf16.gmra.mrb[0].mxu0 %v1702
        %v1949 = vpop.f32.mrb[0].mxu0
        %v1950 = vadd.f32 0.0, %v1949
        %v1951 = vpop.f32.mrb[0].mxu0
        %v1952 = vpop.f32.mrb[0].mxu0
        %v1953 = vadd.f32 0.0, %v1952
        %v1954 = vpop.f32.mrb[0].mxu0
        %1955 = vmatprep.mubr.bf16.mxu0 %v1861
        %1956 = vmatmul.mubr.bf16.gmra.mrb[0].mxu0 %v1704
        %v1957 = vpop.f32.mrb[0].mxu0
        %v1958 = vadd.f32 0.0, %v1957
        %v1959 = vpop.f32.mrb[0].mxu0
        %v1960 = vpop.f32.mrb[0].mxu0
        %v1961 = vadd.f32 0.0, %v1960
        %v1962 = vpop.f32.mrb[0].mxu0
        %1963 = vmatprep.mubr.bf16.mxu0 %v1864
        %1964 = vmatmul.mubr.bf16.gmra.mrb[0].mxu0 %v1706
        %v1965 = vpop.f32.mrb[0].mxu0
        %v1966 = vadd.f32 0.0, %v1965
        %v1967 = vpop.f32.mrb[0].mxu0
        %v1968 = vpop.f32.mrb[0].mxu0
        %v1969 = vadd.f32 0.0, %v1968
        %v1970 = vpop.f32.mrb[0].mxu0
        %1971 = vmatprep.mubr.bf16.mxu0 %v1867
        %1972 = vmatmul.mubr.bf16.gmra.mrb[0].mxu0 %v1708
        %v1973 = vpop.f32.mrb[0].mxu0
        %v1974 = vadd.f32 0.0, %v1973
        %v1975 = vpop.f32.mrb[0].mxu0
        %v1976 = vpop.f32.mrb[0].mxu0
        %v1977 = vadd.f32 0.0, %v1976
        %v1978 = vpop.f32.mrb[0].mxu0
        %1979 = vmatprep.mubr.bf16.mxu0 %v1870
        %1980 = vmatmul.mubr.bf16.gmra.mrb[0].mxu0 %v1710
        %v1981 = vpop.f32.mrb[0].mxu0
        %v1982 = vadd.f32 0.0, %v1981
        %v1983 = vpop.f32.mrb[0].mxu0
        %v1984 = vpop.f32.mrb[0].mxu0
        %v1985 = vadd.f32 0.0, %v1984
        %v1986 = vpop.f32.mrb[0].mxu0
        %1987 = vmatprep.mubr.bf16.mxu0 %v1873
        %1988 = vmatmul.mubr.bf16.gmra.mrb[0].mxu0 %v1712
        %v1989 = vpop.f32.mrb[0].mxu0
        %v1990 = vadd.f32 0.0, %v1989
        %v1991 = vpop.f32.mrb[0].mxu0
        %v1992 = vpop.f32.mrb[0].mxu0
        %v1993 = vadd.f32 0.0, %v1992
        %v1994 = vpop.f32.mrb[0].mxu0
        %1995 = vmatprep.mubr.bf16.mxu0 %v1876
        %1996 = vmatmul.mubr.bf16.gmra.mrb[0].mxu0 %v1714
        %v1997 = vpop.f32.mrb[0].mxu0
        %v1998 = vadd.f32 0.0, %v1997
        %v1999 = vpop.f32.mrb[0].mxu0
        %v2000 = vpop.f32.mrb[0].mxu0
        %v2001 = vadd.f32 0.0, %v2000
        %v2002 = vpop.f32.mrb[0].mxu0
        %2003 = vmatprep.mubr.bf16.mxu0 %v1879
        %2004 = vmatmul.mubr.bf16.gmra.mrb[0].mxu0 %v1716
        %v2005 = vpop.f32.mrb[0].mxu0
        %v2006 = vadd.f32 0.0, %v2005
        %v2007 = vpop.f32.mrb[0].mxu0
        %v2008 = vpop.f32.mrb[0].mxu0
        %v2009 = vadd.f32 0.0, %v2008
        %v2010 = vpop.f32.mrb[0].mxu0
        %2011 = vmatprep.mubr.bf16.mxu0 %v1882
        %2012 = vmatmul.mubr.bf16.gmra.mrb[0].mxu0 %v1718
        %v2013 = vpop.f32.mrb[0].mxu0
        %v2014 = vadd.f32 0.0, %v2013
        %v2015 = vpop.f32.mrb[0].mxu0
        %v2016 = vpop.f32.mrb[0].mxu0
        %v2017 = vadd.f32 0.0, %v2016
        %v2018 = vpop.f32.mrb[0].mxu0
        %2019 = vmatprep.mubr.bf16.mxu0 %v1885
        %2020 = vmatmul.mubr.bf16.gmra.mrb[0].mxu0 %v1720
        %v2021 = vpop.f32.mrb[0].mxu0
        %v2022 = vadd.f32 0.0, %v2021
        %v2023 = vpop.f32.mrb[0].mxu0
        %v2024 = vpop.f32.mrb[0].mxu0
        %v2025 = vadd.f32 0.0, %v2024
        %v2026 = vpop.f32.mrb[0].mxu0
        %2027 = vmatprep.mubr.bf16.mxu0 %v1888
        %2028 = vmatmul.mubr.bf16.gmra.mrb[0].mxu0 %v1722
        %v2029 = vpop.f32.mrb[0].mxu0
        %v2030 = vadd.f32 0.0, %v2029
        %v2031 = vpop.f32.mrb[0].mxu0
        %v2032 = vpop.f32.mrb[0].mxu0
        %v2033 = vadd.f32 0.0, %v2032
        %v2034 = vpop.f32.mrb[0].mxu0
        %2035 = vmatprep.mubr.bf16.mxu0 %v1891
        %2036 = vmatmul.mubr.bf16.gmra.mrb[0].mxu0 %v1724
        %v2037 = vpop.f32.mrb[0].mxu0
        %v2038 = vadd.f32 0.0, %v2037
        %v2039 = vpop.f32.mrb[0].mxu0
        %v2040 = vpop.f32.mrb[0].mxu0
        %v2041 = vadd.f32 0.0, %v2040
        %v2042 = vpop.f32.mrb[0].mxu0
        %2043 = vmatprep.mubr.bf16.mxu0 %v1894
        %2044 = vmatmul.mubr.bf16.gmra.mrb[0].mxu0 %v1726
        %v2045 = vpop.f32.mrb[0].mxu0
        %v2046 = vadd.f32 0.0, %v2045
        %v2047 = vpop.f32.mrb[0].mxu0
        %v2048 = vpop.f32.mrb[0].mxu0
        %v2049 = vadd.f32 0.0, %v2048
        %v2050 = vpop.f32.mrb[0].mxu0
        %2051 = vmatprep.mubr.bf16.mxu0 %v1897
        %2052 = vmatmul.mubr.bf16.gmra.mrb[0].mxu0 %v1728
        %v2053 = vpop.f32.mrb[0].mxu0
        %v2054 = vadd.f32 0.0, %v2053
        %v2055 = vpop.f32.mrb[0].mxu0
        %v2056 = vpop.f32.mrb[0].mxu0
        %v2057 = vadd.f32 0.0, %v2056
        %v2058 = vpop.f32.mrb[0].mxu0
        %2059 = vdwg.mxu0
        %v2084 = vunpack.c.l.b16 %v1730
        %v2085 = vunpack.c.l.b16 %v1731
        %v2086 = vunpack.c.l.b16 %v1732
        %v2087 = vunpack.c.l.b16 %v1733
        %v2088 = vunpack.c.l.b16 %v1734
        %v2089 = vunpack.c.l.b16 %v1735
        %v2090 = vunpack.c.l.b16 %v1736
        %v2091 = vunpack.c.l.b16 %v1737
        %v2092 = vunpack.c.l.b16 %v1738
        %v2093 = vunpack.c.l.b16 %v1739
        %v2094 = vunpack.c.l.b16 %v1740
        %v2095 = vunpack.c.l.b16 %v1741
        %v2096 = vunpack.c.l.b16 %v1742
        %v2097 = vunpack.c.l.b16 %v1743
        %v2098 = vunpack.c.l.b16 %v1744
        %v2099 = vunpack.c.l.b16 %v1745
        %v2100 = vunpack.c.l.b16 %v1746
        %v2101 = vunpack.c.l.b16 %v1747
        %v2102 = vunpack.c.l.b16 %v1748
        %v2103 = vunpack.c.l.b16 %v1749
        %v2104 = vunpack.c.l.b16 %v1750
        %v2105 = vunpack.c.l.b16 %v1751
        %v2106 = vunpack.c.l.b16 %v1752
        %v2107 = vunpack.c.l.b16 %v1753
        %v2108 = vpack.c.b16 %v2085, %v2084
        %v2109 = vpack.c.b16 %v2087, %v2086
        %v2110 = vpack.c.b16 %v2089, %v2088
        %v2111 = vpack.c.b16 %v2091, %v2090
        %v2112 = vpack.c.b16 %v2093, %v2092
        %v2113 = vpack.c.b16 %v2095, %v2094
        %v2114 = vpack.c.b16 %v2097, %v2096
        %v2115 = vpack.c.b16 %v2099, %v2098
        %v2116 = vpack.c.b16 %v2101, %v2100
        %v2117 = vpack.c.b16 %v2103, %v2102
        %v2118 = vpack.c.b16 %v2105, %v2104
        %v2119 = vpack.c.b16 %v2107, %v2106
        %v2133 = vsel %vm429, 0, 0
        %2135 = vmatprep.subr.bf16.mxu0 0
        %2136 = vmatpush1.bf16.msra.mxu0 %v2108
        %2137 = vmatprep.subr.bf16.mxu0 0
        %2138 = vmatpush1.bf16.msra.mxu0 %v2109
        %2139 = vmatprep.subr.bf16.mxu0 0
        %2140 = vmatpush1.bf16.msra.mxu0 %v2110
        %2141 = vmatprep.subr.bf16.mxu0 0
        %2142 = vmatpush1.bf16.msra.mxu0 %v2111
        %2143 = vmatprep.subr.bf16.mxu0 0
        %2144 = vmatpush1.bf16.msra.mxu0 %v2112
        %2145 = vmatprep.subr.bf16.mxu0 0
        %2146 = vmatpush1.bf16.msra.mxu0 %v2113
        %2147 = vmatprep.subr.bf16.mxu0 0
        %2148 = vmatpush1.bf16.msra.mxu0 %v2114
        %2149 = vmatprep.subr.bf16.mxu0 0
        %2150 = vmatpush1.bf16.msra.mxu0 %v2115
        %2151 = vmatprep.subr.bf16.mxu0 0
        %2152 = vmatpush1.bf16.msra.mxu0 %v2116
        %2153 = vmatprep.subr.bf16.mxu0 0
        %2154 = vmatpush1.bf16.msra.mxu0 %v2117
        %2155 = vmatprep.subr.bf16.mxu0 0
        %2156 = vmatpush1.bf16.msra.mxu0 %v2118
        %2157 = vmatprep.subr.bf16.mxu0 0
        %2158 = vmatpush1.bf16.msra.mxu0 %v2119
        %2159 = vmatprep.subr.bf16.mxu0 0
        %2160 = vmatpush1.bf16.msra.mxu0 0
        %2161 = vmatprep.subr.bf16.mxu0 0
        %2162 = vmatpush1.bf16.msra.mxu0 0
        %2163 = vmatprep.subr.bf16.mxu0 0
        %2164 = vmatpush1.bf16.msra.mxu0 0
        %2165 = vmatprep.subr.bf16.mxu0 0
        %2166 = vmatpush1.bf16.msra.mxu0 0
        %2167 = vmatprep.mubr.bf16.mxu0 %v2133
        %2168 = vmatmul.mubr.bf16.gmra.mrb[0].mxu0 0
        %v2169 = vpop.f32.mrb[0].mxu0
        %v2170 = vadd.f32 %v1934, %v2169
        %v2171 = vpop.f32.mrb[0].mxu0
        %v2172 = vpop.f32.mrb[0].mxu0
        %v2173 = vadd.f32 %v1937, %v2172
        %v2174 = vpop.f32.mrb[0].mxu0
        %2175 = vmatprep.mubr.bf16.mxu0 %v1852
        %2176 = vmatmul.mubr.bf16.gmra.mrb[0].mxu0 %v1698
        %v2177 = vpop.f32.mrb[0].mxu0
        %v2178 = vadd.f32 %v1942, %v2177
        %v2179 = vpop.f32.mrb[0].mxu0
        %v2180 = vpop.f32.mrb[0].mxu0
        %v2181 = vadd.f32 %v1945, %v2180
        %v2182 = vpop.f32.mrb[0].mxu0
        %2183 = vmatprep.mubr.bf16.mxu0 %v1855
        %2184 = vmatmul.mubr.bf16.gmra.mrb[0].mxu0 %v1700
        %v2185 = vpop.f32.mrb[0].mxu0
        %v2186 = vadd.f32 %v1950, %v2185
        %v2187 = vpop.f32.mrb[0].mxu0
        %v2188 = vpop.f32.mrb[0].mxu0
        %v2189 = vadd.f32 %v1953, %v2188
        %v2190 = vpop.f32.mrb[0].mxu0
        %2191 = vmatprep.mubr.bf16.mxu0 %v1858
        %2192 = vmatmul.mubr.bf16.gmra.mrb[0].mxu0 %v1702
        %v2193 = vpop.f32.mrb[0].mxu0
        %v2194 = vadd.f32 %v1958, %v2193
        %v2195 = vpop.f32.mrb[0].mxu0
        %v2196 = vpop.f32.mrb[0].mxu0
        %v2197 = vadd.f32 %v1961, %v2196
        %v2198 = vpop.f32.mrb[0].mxu0
        %2199 = vmatprep.mubr.bf16.mxu0 %v1861
        %2200 = vmatmul.mubr.bf16.gmra.mrb[0].mxu0 %v1704
        %v2201 = vpop.f32.mrb[0].mxu0
        %v2202 = vadd.f32 %v1966, %v2201
        %v2203 = vpop.f32.mrb[0].mxu0
        %v2204 = vpop.f32.mrb[0].mxu0
        %v2205 = vadd.f32 %v1969, %v2204
        %v2206 = vpop.f32.mrb[0].mxu0
        %2207 = vmatprep.mubr.bf16.mxu0 %v1864
        %2208 = vmatmul.mubr.bf16.gmra.mrb[0].mxu0 %v1706
        %v2209 = vpop.f32.mrb[0].mxu0
        %v2210 = vadd.f32 %v1974, %v2209
        %v2211 = vpop.f32.mrb[0].mxu0
        %v2212 = vpop.f32.mrb[0].mxu0
        %v2213 = vadd.f32 %v1977, %v2212
        %v2214 = vpop.f32.mrb[0].mxu0
        %2215 = vmatprep.mubr.bf16.mxu0 %v1867
        %2216 = vmatmul.mubr.bf16.gmra.mrb[0].mxu0 %v1708
        %v2217 = vpop.f32.mrb[0].mxu0
        %v2218 = vadd.f32 %v1982, %v2217
        %v2219 = vpop.f32.mrb[0].mxu0
        %v2220 = vpop.f32.mrb[0].mxu0
        %v2221 = vadd.f32 %v1985, %v2220
        %v2222 = vpop.f32.mrb[0].mxu0
        %2223 = vmatprep.mubr.bf16.mxu0 %v1870
        %2224 = vmatmul.mubr.bf16.gmra.mrb[0].mxu0 %v1710
        %v2225 = vpop.f32.mrb[0].mxu0
        %v2226 = vadd.f32 %v1990, %v2225
        %v2227 = vpop.f32.mrb[0].mxu0
        %v2228 = vpop.f32.mrb[0].mxu0
        %v2229 = vadd.f32 %v1993, %v2228
        %v2230 = vpop.f32.mrb[0].mxu0
        %2231 = vmatprep.mubr.bf16.mxu0 %v1873
        %2232 = vmatmul.mubr.bf16.gmra.mrb[0].mxu0 %v1712
        %v2233 = vpop.f32.mrb[0].mxu0
        %v2234 = vadd.f32 %v1998, %v2233
        %v2235 = vpop.f32.mrb[0].mxu0
        %v2236 = vpop.f32.mrb[0].mxu0
        %v2237 = vadd.f32 %v2001, %v2236
        %v2238 = vpop.f32.mrb[0].mxu0
        %2239 = vmatprep.mubr.bf16.mxu0 %v1876
        %2240 = vmatmul.mubr.bf16.gmra.mrb[0].mxu0 %v1714
        %v2241 = vpop.f32.mrb[0].mxu0
        %v2242 = vadd.f32 %v2006, %v2241
        %v2243 = vpop.f32.mrb[0].mxu0
        %v2244 = vpop.f32.mrb[0].mxu0
        %v2245 = vadd.f32 %v2009, %v2244
        %v2246 = vpop.f32.mrb[0].mxu0
        %2247 = vmatprep.mubr.bf16.mxu0 %v1879
        %2248 = vmatmul.mubr.bf16.gmra.mrb[0].mxu0 %v1716
        %v2249 = vpop.f32.mrb[0].mxu0
        %v2250 = vadd.f32 %v2014, %v2249
        %v2251 = vpop.f32.mrb[0].mxu0
        %v2252 = vpop.f32.mrb[0].mxu0
        %v2253 = vadd.f32 %v2017, %v2252
        %v2254 = vpop.f32.mrb[0].mxu0
        %2255 = vmatprep.mubr.bf16.mxu0 %v1882
        %2256 = vmatmul.mubr.bf16.gmra.mrb[0].mxu0 %v1718
        %v2257 = vpop.f32.mrb[0].mxu0
        %v2258 = vadd.f32 %v2022, %v2257
        %v2259 = vpop.f32.mrb[0].mxu0
        %v2260 = vpop.f32.mrb[0].mxu0
        %v2261 = vadd.f32 %v2025, %v2260
        %v2262 = vpop.f32.mrb[0].mxu0
        %2263 = vmatprep.mubr.bf16.mxu0 %v1885
        %2264 = vmatmul.mubr.bf16.gmra.mrb[0].mxu0 %v1720
        %v2265 = vpop.f32.mrb[0].mxu0
        %v2266 = vadd.f32 %v2030, %v2265
        %v2267 = vpop.f32.mrb[0].mxu0
        %v2268 = vpop.f32.mrb[0].mxu0
        %v2269 = vadd.f32 %v2033, %v2268
        %v2270 = vpop.f32.mrb[0].mxu0
        %2271 = vmatprep.mubr.bf16.mxu0 %v1888
        %2272 = vmatmul.mubr.bf16.gmra.mrb[0].mxu0 %v1722
        %v2273 = vpop.f32.mrb[0].mxu0
        %v2274 = vadd.f32 %v2038, %v2273
        %v2275 = vpop.f32.mrb[0].mxu0
        %v2276 = vpop.f32.mrb[0].mxu0
        %v2277 = vadd.f32 %v2041, %v2276
        %v2278 = vpop.f32.mrb[0].mxu0
        %2279 = vmatprep.mubr.bf16.mxu0 %v1891
        %2280 = vmatmul.mubr.bf16.gmra.mrb[0].mxu0 %v1724
        %v2281 = vpop.f32.mrb[0].mxu0
        %v2282 = vadd.f32 %v2046, %v2281
        %v2283 = vpop.f32.mrb[0].mxu0
        %v2284 = vpop.f32.mrb[0].mxu0
        %v2285 = vadd.f32 %v2049, %v2284
        %v2286 = vpop.f32.mrb[0].mxu0
        %2287 = vmatprep.mubr.bf16.mxu0 %v1894
        %2288 = vmatmul.mubr.bf16.gmra.mrb[0].mxu0 %v1726
        %v2289 = vpop.f32.mrb[0].mxu0
        %v2290 = vadd.f32 %v2054, %v2289
        %v2291 = vpop.f32.mrb[0].mxu0
        %v2292 = vpop.f32.mrb[0].mxu0
        %v2293 = vadd.f32 %v2057, %v2292
        %v2294 = vpop.f32.mrb[0].mxu0
        %2295 = vdwg.mxu0
        %s2296 = scalar_lea.vmem %s3, 192
        %v2297 = vld [vmem:[%s2296] sm:$0xf]
        %v2298 = vld [vmem:[%s2296 + $0x4] sm:$0xf]
        %v2299 = vld [vmem:[%s2296 + $0x8] sm:$0xf]
        %v2300 = vld [vmem:[%s2296 + $0xc] sm:$0xf]
        %v2301 = vld [vmem:[%s2296 + $0x10] sm:$0xf]
        %v2302 = vld [vmem:[%s2296 + $0x14] sm:$0xf]
        %v2303 = vld [vmem:[%s2296 + $0x18] sm:$0xf]
        %v2304 = vld [vmem:[%s2296 + $0x1c] sm:$0xf]
        %v2305 = vld [vmem:[%s2296 + $0x20] sm:$0xf]
        %v2306 = vld [vmem:[%s2296 + $0x24] sm:$0xf]
        %v2307 = vld [vmem:[%s2296 + $0x28] sm:$0xf]
        %v2308 = vld [vmem:[%s2296 + $0x2c] sm:$0xf]
        %v2309 = vld [vmem:[%s2296 + $0x30] sm:$0xf]
        %v2310 = vld [vmem:[%s2296 + $0x34] sm:$0xf]
        %v2311 = vld [vmem:[%s2296 + $0x38] sm:$0xf]
        %v2312 = vld [vmem:[%s2296 + $0x3c] sm:$0xf]
        %v2313 = vld [vmem:[%s2296 + $0x40] sm:$0xf]
        %v2314 = vld [vmem:[%s2296 + $0x44] sm:$0xf]
        %v2315 = vld [vmem:[%s2296 + $0x48] sm:$0xf]
        %v2316 = vld [vmem:[%s2296 + $0x4c] sm:$0xf]
        %v2317 = vld [vmem:[%s2296 + $0x50] sm:$0xf]
        %v2318 = vld [vmem:[%s2296 + $0x54] sm:$0xf]
        %v2319 = vld [vmem:[%s2296 + $0x58] sm:$0xf]
        %v2320 = vld [vmem:[%s2296 + $0x5c] sm:$0xf]
        %v2345 = vunpack.c.l.b16 %v2297
        %v2346 = vunpack.c.l.b16 %v2298
        %v2347 = vunpack.c.l.b16 %v2299
        %v2348 = vunpack.c.l.b16 %v2300
        %v2349 = vunpack.c.l.b16 %v2301
        %v2350 = vunpack.c.l.b16 %v2302
        %v2351 = vunpack.c.l.b16 %v2303
        %v2352 = vunpack.c.l.b16 %v2304
        %v2353 = vunpack.c.l.b16 %v2305
        %v2354 = vunpack.c.l.b16 %v2306
        %v2355 = vunpack.c.l.b16 %v2307
        %v2356 = vunpack.c.l.b16 %v2308
        %v2357 = vunpack.c.l.b16 %v2309
        %v2358 = vunpack.c.l.b16 %v2310
        %v2359 = vunpack.c.l.b16 %v2311
        %v2360 = vunpack.c.l.b16 %v2312
        %v2361 = vunpack.c.l.b16 %v2313
        %v2362 = vunpack.c.l.b16 %v2314
        %v2363 = vunpack.c.l.b16 %v2315
        %v2364 = vunpack.c.l.b16 %v2316
        %v2365 = vunpack.c.l.b16 %v2317
        %v2366 = vunpack.c.l.b16 %v2318
        %v2367 = vunpack.c.l.b16 %v2319
        %v2368 = vunpack.c.l.b16 %v2320
        %v2369 = vpack.c.b16 %v2346, %v2345
        %v2370 = vpack.c.b16 %v2348, %v2347
        %v2371 = vpack.c.b16 %v2350, %v2349
        %v2372 = vpack.c.b16 %v2352, %v2351
        %v2373 = vpack.c.b16 %v2354, %v2353
        %v2374 = vpack.c.b16 %v2356, %v2355
        %v2375 = vpack.c.b16 %v2358, %v2357
        %v2376 = vpack.c.b16 %v2360, %v2359
        %v2377 = vpack.c.b16 %v2362, %v2361
        %v2378 = vpack.c.b16 %v2364, %v2363
        %v2379 = vpack.c.b16 %v2366, %v2365
        %v2380 = vpack.c.b16 %v2368, %v2367
        %2393 = vmatprep.subr.bf16.mxu0 0
        %2394 = vmatpush1.bf16.msra.mxu0 %v2369
        %2395 = vmatprep.subr.bf16.mxu0 0
        %2396 = vmatpush1.bf16.msra.mxu0 %v2370
        %2397 = vmatprep.subr.bf16.mxu0 0
        %2398 = vmatpush1.bf16.msra.mxu0 %v2371
        %2399 = vmatprep.subr.bf16.mxu0 0
        %2400 = vmatpush1.bf16.msra.mxu0 %v2372
        %2401 = vmatprep.subr.bf16.mxu0 0
        %2402 = vmatpush1.bf16.msra.mxu0 %v2373
        %2403 = vmatprep.subr.bf16.mxu0 0
        %2404 = vmatpush1.bf16.msra.mxu0 %v2374
        %2405 = vmatprep.subr.bf16.mxu0 0
        %2406 = vmatpush1.bf16.msra.mxu0 %v2375
        %2407 = vmatprep.subr.bf16.mxu0 0
        %2408 = vmatpush1.bf16.msra.mxu0 %v2376
        %2409 = vmatprep.subr.bf16.mxu0 0
        %2410 = vmatpush1.bf16.msra.mxu0 %v2377
        %2411 = vmatprep.subr.bf16.mxu0 0
        %2412 = vmatpush1.bf16.msra.mxu0 %v2378
        %2413 = vmatprep.subr.bf16.mxu0 0
        %2414 = vmatpush1.bf16.msra.mxu0 %v2379
        %2415 = vmatprep.subr.bf16.mxu0 0
        %2416 = vmatpush1.bf16.msra.mxu0 %v2380
        %2417 = vmatprep.subr.bf16.mxu0 0
        %2418 = vmatpush1.bf16.msra.mxu0 0
        %2419 = vmatprep.subr.bf16.mxu0 0
        %2420 = vmatpush1.bf16.msra.mxu0 0
        %2421 = vmatprep.subr.bf16.mxu0 0
        %2422 = vmatpush1.bf16.msra.mxu0 0
        %2423 = vmatprep.subr.bf16.mxu0 0
        %2424 = vmatpush1.bf16.msra.mxu0 0
        %2425 = vmatprep.mubr.bf16.mxu0 %v1855
        %2426 = vmatmul.mubr.bf16.gmra.mrb[0].mxu0 %v1700
        %v2427 = vpop.f32.mrb[0].mxu0
        %v2428 = vadd.f32 0.0, %v2427
        %v2429 = vpop.f32.mrb[0].mxu0
        %v2430 = vpop.f32.mrb[0].mxu0
        %v2431 = vadd.f32 0.0, %v2430
        %v2432 = vpop.f32.mrb[0].mxu0
        %2433 = vmatprep.mubr.bf16.mxu0 %v1858
        %2434 = vmatmul.mubr.bf16.gmra.mrb[0].mxu0 %v1702
        %v2435 = vpop.f32.mrb[0].mxu0
        %v2436 = vadd.f32 0.0, %v2435
        %v2437 = vpop.f32.mrb[0].mxu0
        %v2438 = vpop.f32.mrb[0].mxu0
        %v2439 = vadd.f32 0.0, %v2438
        %v2440 = vpop.f32.mrb[0].mxu0
        %2441 = vmatprep.mubr.bf16.mxu0 %v1861
        %2442 = vmatmul.mubr.bf16.gmra.mrb[0].mxu0 %v1704
        %v2443 = vpop.f32.mrb[0].mxu0
        %v2444 = vadd.f32 0.0, %v2443
        %v2445 = vpop.f32.mrb[0].mxu0
        %v2446 = vpop.f32.mrb[0].mxu0
        %v2447 = vadd.f32 0.0, %v2446
        %v2448 = vpop.f32.mrb[0].mxu0
        %2449 = vmatprep.mubr.bf16.mxu0 %v1864
        %2450 = vmatmul.mubr.bf16.gmra.mrb[0].mxu0 %v1706
        %v2451 = vpop.f32.mrb[0].mxu0
        %v2452 = vadd.f32 0.0, %v2451
        %v2453 = vpop.f32.mrb[0].mxu0
        %v2454 = vpop.f32.mrb[0].mxu0
        %v2455 = vadd.f32 0.0, %v2454
        %v2456 = vpop.f32.mrb[0].mxu0
        %2457 = vmatprep.mubr.bf16.mxu0 %v1867
        %2458 = vmatmul.mubr.bf16.gmra.mrb[0].mxu0 %v1708
        %v2459 = vpop.f32.mrb[0].mxu0
        %v2460 = vadd.f32 0.0, %v2459
        %v2461 = vpop.f32.mrb[0].mxu0
        %v2462 = vpop.f32.mrb[0].mxu0
        %v2463 = vadd.f32 0.0, %v2462
        %v2464 = vpop.f32.mrb[0].mxu0
        %2465 = vmatprep.mubr.bf16.mxu0 %v1870
        %2466 = vmatmul.mubr.bf16.gmra.mrb[0].mxu0 %v1710
        %v2467 = vpop.f32.mrb[0].mxu0
        %v2468 = vadd.f32 0.0, %v2467
        %v2469 = vpop.f32.mrb[0].mxu0
        %v2470 = vpop.f32.mrb[0].mxu0
        %v2471 = vadd.f32 0.0, %v2470
        %v2472 = vpop.f32.mrb[0].mxu0
        %2473 = vmatprep.mubr.bf16.mxu0 %v1873
        %2474 = vmatmul.mubr.bf16.gmra.mrb[0].mxu0 %v1712
        %v2475 = vpop.f32.mrb[0].mxu0
        %v2476 = vadd.f32 0.0, %v2475
        %v2477 = vpop.f32.mrb[0].mxu0
        %v2478 = vpop.f32.mrb[0].mxu0
        %v2479 = vadd.f32 0.0, %v2478
        %v2480 = vpop.f32.mrb[0].mxu0
        %2481 = vmatprep.mubr.bf16.mxu0 %v1876
        %2482 = vmatmul.mubr.bf16.gmra.mrb[0].mxu0 %v1714
        %v2483 = vpop.f32.mrb[0].mxu0
        %v2484 = vadd.f32 0.0, %v2483
        %v2485 = vpop.f32.mrb[0].mxu0
        %v2486 = vpop.f32.mrb[0].mxu0
        %v2487 = vadd.f32 0.0, %v2486
        %v2488 = vpop.f32.mrb[0].mxu0
        %2489 = vmatprep.mubr.bf16.mxu0 %v1879
        %2490 = vmatmul.mubr.bf16.gmra.mrb[0].mxu0 %v1716
        %v2491 = vpop.f32.mrb[0].mxu0
        %v2492 = vadd.f32 0.0, %v2491
        %v2493 = vpop.f32.mrb[0].mxu0
        %v2494 = vpop.f32.mrb[0].mxu0
        %v2495 = vadd.f32 0.0, %v2494
        %v2496 = vpop.f32.mrb[0].mxu0
        %2497 = vmatprep.mubr.bf16.mxu0 %v1882
        %2498 = vmatmul.mubr.bf16.gmra.mrb[0].mxu0 %v1718
        %v2499 = vpop.f32.mrb[0].mxu0
        %v2500 = vadd.f32 0.0, %v2499
        %v2501 = vpop.f32.mrb[0].mxu0
        %v2502 = vpop.f32.mrb[0].mxu0
        %v2503 = vadd.f32 0.0, %v2502
        %v2504 = vpop.f32.mrb[0].mxu0
        %2505 = vmatprep.mubr.bf16.mxu0 %v1885
        %2506 = vmatmul.mubr.bf16.gmra.mrb[0].mxu0 %v1720
        %v2507 = vpop.f32.mrb[0].mxu0
        %v2508 = vadd.f32 0.0, %v2507
        %v2509 = vpop.f32.mrb[0].mxu0
        %v2510 = vpop.f32.mrb[0].mxu0
        %v2511 = vadd.f32 0.0, %v2510
        %v2512 = vpop.f32.mrb[0].mxu0
        %2513 = vmatprep.mubr.bf16.mxu0 %v1888
        %2514 = vmatmul.mubr.bf16.gmra.mrb[0].mxu0 %v1722
        %v2515 = vpop.f32.mrb[0].mxu0
        %v2516 = vadd.f32 0.0, %v2515
        %v2517 = vpop.f32.mrb[0].mxu0
        %v2518 = vpop.f32.mrb[0].mxu0
        %v2519 = vadd.f32 0.0, %v2518
        %v2520 = vpop.f32.mrb[0].mxu0
        %2521 = vmatprep.mubr.bf16.mxu0 %v1891
        %2522 = vmatmul.mubr.bf16.gmra.mrb[0].mxu0 %v1724
        %v2523 = vpop.f32.mrb[0].mxu0
        %v2524 = vadd.f32 0.0, %v2523
        %v2525 = vpop.f32.mrb[0].mxu0
        %v2526 = vpop.f32.mrb[0].mxu0
        %v2527 = vadd.f32 0.0, %v2526
        %v2528 = vpop.f32.mrb[0].mxu0
        %2529 = vmatprep.mubr.bf16.mxu0 %v1894
        %2530 = vmatmul.mubr.bf16.gmra.mrb[0].mxu0 %v1726
        %v2531 = vpop.f32.mrb[0].mxu0
        %v2532 = vadd.f32 0.0, %v2531
        %v2533 = vpop.f32.mrb[0].mxu0
        %v2534 = vpop.f32.mrb[0].mxu0
        %v2535 = vadd.f32 0.0, %v2534
        %v2536 = vpop.f32.mrb[0].mxu0
        %2537 = vmatprep.mubr.bf16.mxu0 %v1897
        %2538 = vmatmul.mubr.bf16.gmra.mrb[0].mxu0 %v1728
        %v2539 = vpop.f32.mrb[0].mxu0
        %v2540 = vadd.f32 0.0, %v2539
        %v2541 = vpop.f32.mrb[0].mxu0
        %v2542 = vpop.f32.mrb[0].mxu0
        %v2543 = vadd.f32 0.0, %v2542
        %v2544 = vpop.f32.mrb[0].mxu0
        %2545 = vmatprep.mubr.bf16.mxu0 %v2133
        %2546 = vmatmul.mubr.bf16.gmra.mrb[0].mxu0 0
        %v2547 = vpop.f32.mrb[0].mxu0
        %v2548 = vadd.f32 0.0, %v2547
        %v2549 = vpop.f32.mrb[0].mxu0
        %v2550 = vpop.f32.mrb[0].mxu0
        %v2551 = vadd.f32 0.0, %v2550
        %v2552 = vpop.f32.mrb[0].mxu0
        %2553 = vdwg.mxu0
        %v2554 = vadd.f32 %v2170, %v2428
        %v2555 = vadd.f32 %v2173, %v2431
        %v2556 = vadd.f32 %v2178, %v2436
        %v2557 = vadd.f32 %v2181, %v2439
        %v2558 = vadd.f32 %v2186, %v2444
        %v2559 = vadd.f32 %v2189, %v2447
        %v2560 = vadd.f32 %v2194, %v2452
        %v2561 = vadd.f32 %v2197, %v2455
        %v2562 = vadd.f32 %v2202, %v2460
        %v2563 = vadd.f32 %v2205, %v2463
        %v2564 = vadd.f32 %v2210, %v2468
        %v2565 = vadd.f32 %v2213, %v2471
        %v2566 = vadd.f32 %v2218, %v2476
        %v2567 = vadd.f32 %v2221, %v2479
        %v2568 = vadd.f32 %v2226, %v2484
        %v2569 = vadd.f32 %v2229, %v2487
        %v2570 = vadd.f32 %v2234, %v2492
        %v2571 = vadd.f32 %v2237, %v2495
        %v2572 = vadd.f32 %v2242, %v2500
        %v2573 = vadd.f32 %v2245, %v2503
        %v2574 = vadd.f32 %v2250, %v2508
        %v2575 = vadd.f32 %v2253, %v2511
        %v2576 = vadd.f32 %v2258, %v2516
        %v2577 = vadd.f32 %v2261, %v2519
        %v2578 = vadd.f32 %v2266, %v2524
        %v2579 = vadd.f32 %v2269, %v2527
        %v2580 = vadd.f32 %v2274, %v2532
        %v2581 = vadd.f32 %v2277, %v2535
        %v2582 = vadd.f32 %v2282, %v2540
        %v2583 = vadd.f32 %v2285, %v2543
        %v2584 = vadd.f32 %v2290, %v2548
        %v2585 = vadd.f32 %v2293, %v2551
        %v2586 = vld [vmem:[%s4] sm:$0x1]
        %v2588 = vlaneseq
        %v2589 = vshrl.u32 %v2588, 7
        %v2590 = vsub.s32 0, %v2589
        %v2591 = vrot.slane %v2586, %v2590
        %v2593 = vadd.f32 %v2554, %v2591
        %v2594 = vadd.f32 %v2555, %v2591
        %v2595 = vadd.f32 %v2556, %v2591
        %v2596 = vadd.f32 %v2557, %v2591
        %v2597 = vadd.f32 %v2558, %v2591
        %v2598 = vadd.f32 %v2559, %v2591
        %v2599 = vadd.f32 %v2560, %v2591
        %v2600 = vadd.f32 %v2561, %v2591
        %v2601 = vadd.f32 %v2562, %v2591
        %v2602 = vadd.f32 %v2563, %v2591
        %v2603 = vadd.f32 %v2564, %v2591
        %v2604 = vadd.f32 %v2565, %v2591
        %v2605 = vadd.f32 %v2566, %v2591
        %v2606 = vadd.f32 %v2567, %v2591
        %v2607 = vadd.f32 %v2568, %v2591
        %v2608 = vadd.f32 %v2569, %v2591
        %v2609 = vadd.f32 %v2570, %v2591
        %v2610 = vadd.f32 %v2571, %v2591
        %v2611 = vadd.f32 %v2572, %v2591
        %v2612 = vadd.f32 %v2573, %v2591
        %v2613 = vadd.f32 %v2574, %v2591
        %v2614 = vadd.f32 %v2575, %v2591
        %v2615 = vadd.f32 %v2576, %v2591
        %v2616 = vadd.f32 %v2577, %v2591
        %v2617 = vadd.f32 %v2578, %v2591
        %v2618 = vadd.f32 %v2579, %v2591
        %v2619 = vadd.f32 %v2580, %v2591
        %v2620 = vadd.f32 %v2581, %v2591
        %v2621 = vadd.f32 %v2582, %v2591
        %v2622 = vadd.f32 %v2583, %v2591
        %v2623 = vadd.f32 %v2584, %v2591
        %v2624 = vadd.f32 %v2585, %v2591
        %v2625 = vmax.f32 %v2593, 0.0
        %v2626 = vmax.f32 %v2594, 0.0
        %v2627 = vmax.f32 %v2595, 0.0
        %v2628 = vmax.f32 %v2596, 0.0
        %v2629 = vmax.f32 %v2597, 0.0
        %v2630 = vmax.f32 %v2598, 0.0
        %v2631 = vmax.f32 %v2599, 0.0
        %v2632 = vmax.f32 %v2600, 0.0
        %v2633 = vmax.f32 %v2601, 0.0
        %v2634 = vmax.f32 %v2602, 0.0
        %v2635 = vmax.f32 %v2603, 0.0
        %v2636 = vmax.f32 %v2604, 0.0
        %v2637 = vmax.f32 %v2605, 0.0
        %v2638 = vmax.f32 %v2606, 0.0
        %v2639 = vmax.f32 %v2607, 0.0
        %v2640 = vmax.f32 %v2608, 0.0
        %v2641 = vmax.f32 %v2609, 0.0
        %v2642 = vmax.f32 %v2610, 0.0
        %v2643 = vmax.f32 %v2611, 0.0
        %v2644 = vmax.f32 %v2612, 0.0
        %v2645 = vmax.f32 %v2613, 0.0
        %v2646 = vmax.f32 %v2614, 0.0
        %v2647 = vmax.f32 %v2615, 0.0
        %v2648 = vmax.f32 %v2616, 0.0
        %v2649 = vmax.f32 %v2617, 0.0
        %v2650 = vmax.f32 %v2618, 0.0
        %v2651 = vmax.f32 %v2619, 0.0
        %v2652 = vmax.f32 %v2620, 0.0
        %v2653 = vmax.f32 %v2621, 0.0
        %v2654 = vmax.f32 %v2622, 0.0
        %v2655 = vmax.f32 %v2623, 0.0
        %v2656 = vmax.f32 %v2624, 0.0
        %v2657 = vpack.c.bf16 %v2626, %v2625
        %v2658 = vpack.c.bf16 %v2628, %v2627
        %v2659 = vpack.c.bf16 %v2630, %v2629
        %v2660 = vpack.c.bf16 %v2632, %v2631
        %v2661 = vpack.c.bf16 %v2634, %v2633
        %v2662 = vpack.c.bf16 %v2636, %v2635
        %v2663 = vpack.c.bf16 %v2638, %v2637
        %v2664 = vpack.c.bf16 %v2640, %v2639
        %v2665 = vpack.c.bf16 %v2642, %v2641
        %v2666 = vpack.c.bf16 %v2644, %v2643
        %v2667 = vpack.c.bf16 %v2646, %v2645
        %v2668 = vpack.c.bf16 %v2648, %v2647
        %v2669 = vpack.c.bf16 %v2650, %v2649
        %v2670 = vpack.c.bf16 %v2652, %v2651
        %v2671 = vpack.c.bf16 %v2654, %v2653
        %v2672 = vpack.c.bf16 %v2656, %v2655
        %2673 = vrot.lane.b32.xlu0 %v389, 64
        %v2674 = vpop.permute.xlu0 %2673
        %2675 = vrot.lane.b32.xlu0 %v390, 64
        %v2676 = vpop.permute.xlu0 %2675
        %2677 = vrot.lane.b32.xlu0 %v391, 64
        %v2678 = vpop.permute.xlu0 %2677
        %2679 = vrot.lane.b32.xlu0 %v392, 64
        %v2680 = vpop.permute.xlu0 %2679
        %2681 = vrot.lane.b32.xlu0 %v393, 64
        %v2682 = vpop.permute.xlu0 %2681
        %2683 = vrot.lane.b32.xlu0 %v394, 64
        %v2684 = vpop.permute.xlu0 %2683
        %2685 = vrot.lane.b32.xlu0 %v395, 64
        %v2686 = vpop.permute.xlu0 %2685
        %2687 = vrot.lane.b32.xlu0 %v396, 64
        %v2688 = vpop.permute.xlu0 %2687
        %2689 = vrot.lane.b32.xlu0 %v397, 64
        %v2690 = vpop.permute.xlu0 %2689
        %2691 = vrot.lane.b32.xlu0 %v398, 64
        %v2692 = vpop.permute.xlu0 %2691
        %2693 = vrot.lane.b32.xlu0 %v399, 64
        %v2694 = vpop.permute.xlu0 %2693
        %2695 = vrot.lane.b32.xlu0 %v400, 64
        %v2696 = vpop.permute.xlu0 %2695
        %2697 = vrot.lane.b32.xlu0 %v401, 64
        %v2698 = vpop.permute.xlu0 %2697
        %2699 = vrot.lane.b32.xlu0 %v402, 64
        %v2700 = vpop.permute.xlu0 %2699
        %2701 = vrot.lane.b32.xlu0 %v403, 64
        %v2702 = vpop.permute.xlu0 %2701
        %2703 = vrot.lane.b32.xlu0 %v404, 64
        %v2704 = vpop.permute.xlu0 %2703
        %v2707 = vsel %vm429, %v2657, %v2674
        %v2711 = vsel %vm429, %v2658, %v2676
        %v2715 = vsel %vm429, %v2659, %v2678
        %v2719 = vsel %vm429, %v2660, %v2680
        %v2723 = vsel %vm429, %v2661, %v2682
        %v2727 = vsel %vm429, %v2662, %v2684
        %v2731 = vsel %vm429, %v2663, %v2686
        %v2735 = vsel %vm429, %v2664, %v2688
        %v2739 = vsel %vm429, %v2665, %v2690
        %v2743 = vsel %vm429, %v2666, %v2692
        %v2747 = vsel %vm429, %v2667, %v2694
        %v2751 = vsel %vm429, %v2668, %v2696
        %v2755 = vsel %vm429, %v2669, %v2698
        %v2759 = vsel %vm429, %v2670, %v2700
        %v2763 = vsel %vm429, %v2671, %v2702
        %v2767 = vsel %vm429, %v2672, %v2704
        %v2769 = vld [vmem:[%s5] sm:$0xff]
        %v2770 = vld [vmem:[%s5 + $0x8] sm:$0xff]
        %v2771 = vld [vmem:[%s5 + $0x10] sm:$0xff]
        %v2772 = vld [vmem:[%s5 + $0x18] sm:$0xff]
        %v2773 = vld [vmem:[%s5 + $0x20] sm:$0xff]
        %v2774 = vld [vmem:[%s5 + $0x28] sm:$0xff]
        %v2775 = vld [vmem:[%s5 + $0x30] sm:$0xff]
        %v2776 = vld [vmem:[%s5 + $0x38] sm:$0xff]
        %v2777 = vld [vmem:[%s5 + $0x40] sm:$0xff]
        %v2778 = vld [vmem:[%s5 + $0x48] sm:$0xff]
        %v2779 = vld [vmem:[%s5 + $0x50] sm:$0xff]
        %v2780 = vld [vmem:[%s5 + $0x58] sm:$0xff]
        %v2781 = vld [vmem:[%s5 + $0x60] sm:$0xff]
        %v2782 = vld [vmem:[%s5 + $0x68] sm:$0xff]
        %v2783 = vld [vmem:[%s5 + $0x70] sm:$0xff]
        %v2784 = vld [vmem:[%s5 + $0x78] sm:$0xff]
        %v2785 = vld [vmem:[%s6] sm:$0x3]
        %v2787 = vlaneseq
        %v2788 = vshrl.u32 %v2787, 7
        %v2789 = vsub.s32 0, %v2788
        %v2790 = vrot.slane %v2785, %v2789
        %v2791 = vlaneseq
        %v2792 = vshrl.u32 %v2791, 7
        %v2793 = vsub.s32 1, %v2792
        %v2794 = vrot.slane %v2785, %v2793
        %v2813 = vunpack.c.l.b16 %v2769
        %v2814 = vunpack.c.h.b16 %v2769
        %v2815 = vunpack.c.l.b16 %v2770
        %v2816 = vunpack.c.h.b16 %v2770
        %v2817 = vunpack.c.l.b16 %v2771
        %v2818 = vunpack.c.h.b16 %v2771
        %v2819 = vunpack.c.l.b16 %v2772
        %v2820 = vunpack.c.h.b16 %v2772
        %v2821 = vunpack.c.l.b16 %v2773
        %v2822 = vunpack.c.h.b16 %v2773
        %v2823 = vunpack.c.l.b16 %v2774
        %v2824 = vunpack.c.h.b16 %v2774
        %v2825 = vunpack.c.l.b16 %v2775
        %v2826 = vunpack.c.h.b16 %v2775
        %v2827 = vunpack.c.l.b16 %v2776
        %v2828 = vunpack.c.h.b16 %v2776
        %v2829 = vunpack.c.l.b16 %v2777
        %v2830 = vunpack.c.h.b16 %v2777
        %v2831 = vunpack.c.l.b16 %v2778
        %v2832 = vunpack.c.h.b16 %v2778
        %v2833 = vunpack.c.l.b16 %v2779
        %v2834 = vunpack.c.h.b16 %v2779
        %v2835 = vunpack.c.l.b16 %v2780
        %v2836 = vunpack.c.h.b16 %v2780
        %v2837 = vunpack.c.l.b16 %v2781
        %v2838 = vunpack.c.h.b16 %v2781
        %v2839 = vunpack.c.l.b16 %v2782
        %v2840 = vunpack.c.h.b16 %v2782
        %v2841 = vunpack.c.l.b16 %v2783
        %v2842 = vunpack.c.h.b16 %v2783
        %v2843 = vunpack.c.l.b16 %v2784
        %v2844 = vunpack.c.h.b16 %v2784
        %v2845 = vpack.c.b16 %v2815, %v2813
        %v2846 = vpack.c.b16 %v2816, %v2814
        %v2847 = vpack.c.b16 %v2819, %v2817
        %v2848 = vpack.c.b16 %v2820, %v2818
        %v2849 = vpack.c.b16 %v2823, %v2821
        %v2850 = vpack.c.b16 %v2824, %v2822
        %v2851 = vpack.c.b16 %v2827, %v2825
        %v2852 = vpack.c.b16 %v2828, %v2826
        %v2853 = vpack.c.b16 %v2831, %v2829
        %v2854 = vpack.c.b16 %v2832, %v2830
        %v2855 = vpack.c.b16 %v2835, %v2833
        %v2856 = vpack.c.b16 %v2836, %v2834
        %v2857 = vpack.c.b16 %v2839, %v2837
        %v2858 = vpack.c.b16 %v2840, %v2838
        %v2859 = vpack.c.b16 %v2843, %v2841
        %v2860 = vpack.c.b16 %v2844, %v2842
        %2877 = vmatprep.subr.bf16.mxu0 %v2846
        %2878 = vmatpush1.bf16.msra.mxu0 %v2845
        %2879 = vmatprep.subr.bf16.mxu0 %v2848
        %2880 = vmatpush1.bf16.msra.mxu0 %v2847
        %2881 = vmatprep.subr.bf16.mxu0 %v2850
        %2882 = vmatpush1.bf16.msra.mxu0 %v2849
        %2883 = vmatprep.subr.bf16.mxu0 %v2852
        %2884 = vmatpush1.bf16.msra.mxu0 %v2851
        %2885 = vmatprep.subr.bf16.mxu0 %v2854
        %2886 = vmatpush1.bf16.msra.mxu0 %v2853
        %2887 = vmatprep.subr.bf16.mxu0 %v2856
        %2888 = vmatpush1.bf16.msra.mxu0 %v2855
        %2889 = vmatprep.subr.bf16.mxu0 %v2858
        %2890 = vmatpush1.bf16.msra.mxu0 %v2857
        %2891 = vmatprep.subr.bf16.mxu0 %v2860
        %2892 = vmatpush1.bf16.msra.mxu0 %v2859
        %2893 = vmatprep.subr.bf16.mxu0 0
        %2894 = vmatpush1.bf16.msra.mxu0 0
        %2895 = vmatprep.subr.bf16.mxu0 0
        %2896 = vmatpush1.bf16.msra.mxu0 0
        %2897 = vmatprep.subr.bf16.mxu0 0
        %2898 = vmatpush1.bf16.msra.mxu0 0
        %2899 = vmatprep.subr.bf16.mxu0 0
        %2900 = vmatpush1.bf16.msra.mxu0 0
        %2901 = vmatprep.subr.bf16.mxu0 0
        %2902 = vmatpush1.bf16.msra.mxu0 0
        %2903 = vmatprep.subr.bf16.mxu0 0
        %2904 = vmatpush1.bf16.msra.mxu0 0
        %2905 = vmatprep.subr.bf16.mxu0 0
        %2906 = vmatpush1.bf16.msra.mxu0 0
        %2907 = vmatprep.subr.bf16.mxu0 0
        %2908 = vmatpush1.bf16.msra.mxu0 0
        %2909 = vmatprep.mubr.bf16.mxu0 0
        %2910 = vmatmul.mubr.bf16.gmra.mrb[0].mxu0 %v2707
        %v2911 = vpop.f32.mrb[0].mxu0
        %v2912 = vadd.f32 %v2790, %v2911
        %v2913 = vpop.f32.mrb[0].mxu0
        %v2914 = vadd.f32 %v2794, %v2913
        %v2915 = vpop.f32.mrb[0].mxu0
        %v2916 = vadd.f32 %v2790, %v2915
        %v2917 = vpop.f32.mrb[0].mxu0
        %v2918 = vadd.f32 %v2794, %v2917
        %2919 = vmatprep.mubr.bf16.mxu0 0
        %2920 = vmatmul.mubr.bf16.gmra.mrb[0].mxu0 %v2711
        %v2921 = vpop.f32.mrb[0].mxu0
        %v2922 = vadd.f32 %v2790, %v2921
        %v2923 = vpop.f32.mrb[0].mxu0
        %v2924 = vadd.f32 %v2794, %v2923
        %v2925 = vpop.f32.mrb[0].mxu0
        %v2926 = vadd.f32 %v2790, %v2925
        %v2927 = vpop.f32.mrb[0].mxu0
        %v2928 = vadd.f32 %v2794, %v2927
        %2929 = vmatprep.mubr.bf16.mxu0 0
        %2930 = vmatmul.mubr.bf16.gmra.mrb[0].mxu0 %v2715
        %v2931 = vpop.f32.mrb[0].mxu0
        %v2932 = vadd.f32 %v2790, %v2931
        %v2933 = vpop.f32.mrb[0].mxu0
        %v2934 = vadd.f32 %v2794, %v2933
        %v2935 = vpop.f32.mrb[0].mxu0
        %v2936 = vadd.f32 %v2790, %v2935
        %v2937 = vpop.f32.mrb[0].mxu0
        %v2938 = vadd.f32 %v2794, %v2937
        %2939 = vmatprep.mubr.bf16.mxu0 0
        %2940 = vmatmul.mubr.bf16.gmra.mrb[0].mxu0 %v2719
        %v2941 = vpop.f32.mrb[0].mxu0
        %v2942 = vadd.f32 %v2790, %v2941
        %v2943 = vpop.f32.mrb[0].mxu0
        %v2944 = vadd.f32 %v2794, %v2943
        %v2945 = vpop.f32.mrb[0].mxu0
        %v2946 = vadd.f32 %v2790, %v2945
        %v2947 = vpop.f32.mrb[0].mxu0
        %v2948 = vadd.f32 %v2794, %v2947
        %2949 = vmatprep.mubr.bf16.mxu0 0
        %2950 = vmatmul.mubr.bf16.gmra.mrb[0].mxu0 %v2723
        %v2951 = vpop.f32.mrb[0].mxu0
        %v2952 = vadd.f32 %v2790, %v2951
        %v2953 = vpop.f32.mrb[0].mxu0
        %v2954 = vadd.f32 %v2794, %v2953
        %v2955 = vpop.f32.mrb[0].mxu0
        %v2956 = vadd.f32 %v2790, %v2955
        %v2957 = vpop.f32.mrb[0].mxu0
        %v2958 = vadd.f32 %v2794, %v2957
        %2959 = vmatprep.mubr.bf16.mxu0 0
        %2960 = vmatmul.mubr.bf16.gmra.mrb[0].mxu0 %v2727
        %v2961 = vpop.f32.mrb[0].mxu0
        %v2962 = vadd.f32 %v2790, %v2961
        %v2963 = vpop.f32.mrb[0].mxu0
        %v2964 = vadd.f32 %v2794, %v2963
        %v2965 = vpop.f32.mrb[0].mxu0
        %v2966 = vadd.f32 %v2790, %v2965
        %v2967 = vpop.f32.mrb[0].mxu0
        %v2968 = vadd.f32 %v2794, %v2967
        %2969 = vmatprep.mubr.bf16.mxu0 0
        %2970 = vmatmul.mubr.bf16.gmra.mrb[0].mxu0 %v2731
        %v2971 = vpop.f32.mrb[0].mxu0
        %v2972 = vadd.f32 %v2790, %v2971
        %v2973 = vpop.f32.mrb[0].mxu0
        %v2974 = vadd.f32 %v2794, %v2973
        %v2975 = vpop.f32.mrb[0].mxu0
        %v2976 = vadd.f32 %v2790, %v2975
        %v2977 = vpop.f32.mrb[0].mxu0
        %v2978 = vadd.f32 %v2794, %v2977
        %2979 = vmatprep.mubr.bf16.mxu0 0
        %2980 = vmatmul.mubr.bf16.gmra.mrb[0].mxu0 %v2735
        %v2981 = vpop.f32.mrb[0].mxu0
        %v2982 = vadd.f32 %v2790, %v2981
        %v2983 = vpop.f32.mrb[0].mxu0
        %v2984 = vadd.f32 %v2794, %v2983
        %v2985 = vpop.f32.mrb[0].mxu0
        %v2986 = vadd.f32 %v2790, %v2985
        %v2987 = vpop.f32.mrb[0].mxu0
        %v2988 = vadd.f32 %v2794, %v2987
        %2989 = vmatprep.mubr.bf16.mxu0 0
        %2990 = vmatmul.mubr.bf16.gmra.mrb[0].mxu0 %v2739
        %v2991 = vpop.f32.mrb[0].mxu0
        %v2992 = vadd.f32 %v2790, %v2991
        %v2993 = vpop.f32.mrb[0].mxu0
        %v2994 = vadd.f32 %v2794, %v2993
        %v2995 = vpop.f32.mrb[0].mxu0
        %v2996 = vadd.f32 %v2790, %v2995
        %v2997 = vpop.f32.mrb[0].mxu0
        %v2998 = vadd.f32 %v2794, %v2997
        %2999 = vmatprep.mubr.bf16.mxu0 0
        %3000 = vmatmul.mubr.bf16.gmra.mrb[0].mxu0 %v2743
        %v3001 = vpop.f32.mrb[0].mxu0
        %v3002 = vadd.f32 %v2790, %v3001
        %v3003 = vpop.f32.mrb[0].mxu0
        %v3004 = vadd.f32 %v2794, %v3003
        %v3005 = vpop.f32.mrb[0].mxu0
        %v3006 = vadd.f32 %v2790, %v3005
        %v3007 = vpop.f32.mrb[0].mxu0
        %v3008 = vadd.f32 %v2794, %v3007
        %3009 = vmatprep.mubr.bf16.mxu0 0
        %3010 = vmatmul.mubr.bf16.gmra.mrb[0].mxu0 %v2747
        %v3011 = vpop.f32.mrb[0].mxu0
        %v3012 = vadd.f32 %v2790, %v3011
        %v3013 = vpop.f32.mrb[0].mxu0
        %v3014 = vadd.f32 %v2794, %v3013
        %v3015 = vpop.f32.mrb[0].mxu0
        %v3016 = vadd.f32 %v2790, %v3015
        %v3017 = vpop.f32.mrb[0].mxu0
        %v3018 = vadd.f32 %v2794, %v3017
        %3019 = vmatprep.mubr.bf16.mxu0 0
        %3020 = vmatmul.mubr.bf16.gmra.mrb[0].mxu0 %v2751
        %v3021 = vpop.f32.mrb[0].mxu0
        %v3022 = vadd.f32 %v2790, %v3021
        %v3023 = vpop.f32.mrb[0].mxu0
        %v3024 = vadd.f32 %v2794, %v3023
        %v3025 = vpop.f32.mrb[0].mxu0
        %v3026 = vadd.f32 %v2790, %v3025
        %v3027 = vpop.f32.mrb[0].mxu0
        %v3028 = vadd.f32 %v2794, %v3027
        %3029 = vmatprep.mubr.bf16.mxu0 0
        %3030 = vmatmul.mubr.bf16.gmra.mrb[0].mxu0 %v2755
        %v3031 = vpop.f32.mrb[0].mxu0
        %v3032 = vadd.f32 %v2790, %v3031
        %v3033 = vpop.f32.mrb[0].mxu0
        %v3034 = vadd.f32 %v2794, %v3033
        %v3035 = vpop.f32.mrb[0].mxu0
        %v3036 = vadd.f32 %v2790, %v3035
        %v3037 = vpop.f32.mrb[0].mxu0
        %v3038 = vadd.f32 %v2794, %v3037
        %3039 = vmatprep.mubr.bf16.mxu0 0
        %3040 = vmatmul.mubr.bf16.gmra.mrb[0].mxu0 %v2759
        %v3041 = vpop.f32.mrb[0].mxu0
        %v3042 = vadd.f32 %v2790, %v3041
        %v3043 = vpop.f32.mrb[0].mxu0
        %v3044 = vadd.f32 %v2794, %v3043
        %v3045 = vpop.f32.mrb[0].mxu0
        %v3046 = vadd.f32 %v2790, %v3045
        %v3047 = vpop.f32.mrb[0].mxu0
        %v3048 = vadd.f32 %v2794, %v3047
        %3049 = vmatprep.mubr.bf16.mxu0 0
        %3050 = vmatmul.mubr.bf16.gmra.mrb[0].mxu0 %v2763
        %v3051 = vpop.f32.mrb[0].mxu0
        %v3052 = vadd.f32 %v2790, %v3051
        %v3053 = vpop.f32.mrb[0].mxu0
        %v3054 = vadd.f32 %v2794, %v3053
        %v3055 = vpop.f32.mrb[0].mxu0
        %v3056 = vadd.f32 %v2790, %v3055
        %v3057 = vpop.f32.mrb[0].mxu0
        %v3058 = vadd.f32 %v2794, %v3057
        %3059 = vmatprep.mubr.bf16.mxu0 0
        %3060 = vmatmul.mubr.bf16.gmra.mrb[0].mxu0 %v2767
        %v3061 = vpop.f32.mrb[0].mxu0
        %v3062 = vadd.f32 %v2790, %v3061
        %v3063 = vpop.f32.mrb[0].mxu0
        %v3064 = vadd.f32 %v2794, %v3063
        %v3065 = vpop.f32.mrb[0].mxu0
        %v3066 = vadd.f32 %v2790, %v3065
        %v3067 = vpop.f32.mrb[0].mxu0
        %v3068 = vadd.f32 %v2794, %v3067
        %3069 = vdwg.mxu0
        %v3070 = vmax.f32 %v2912, 0.0
        %v3071 = vmax.f32 %v2914, 0.0
        %v3072 = vmax.f32 %v2916, 0.0
        %v3073 = vmax.f32 %v2918, 0.0
        %v3074 = vmax.f32 %v2922, 0.0
        %v3075 = vmax.f32 %v2924, 0.0
        %v3076 = vmax.f32 %v2926, 0.0
        %v3077 = vmax.f32 %v2928, 0.0
        %v3078 = vmax.f32 %v2932, 0.0
        %v3079 = vmax.f32 %v2934, 0.0
        %v3080 = vmax.f32 %v2936, 0.0
        %v3081 = vmax.f32 %v2938, 0.0
        %v3082 = vmax.f32 %v2942, 0.0
        %v3083 = vmax.f32 %v2944, 0.0
        %v3084 = vmax.f32 %v2946, 0.0
        %v3085 = vmax.f32 %v2948, 0.0
        %v3086 = vmax.f32 %v2952, 0.0
        %v3087 = vmax.f32 %v2954, 0.0
        %v3088 = vmax.f32 %v2956, 0.0
        %v3089 = vmax.f32 %v2958, 0.0
        %v3090 = vmax.f32 %v2962, 0.0
        %v3091 = vmax.f32 %v2964, 0.0
        %v3092 = vmax.f32 %v2966, 0.0
        %v3093 = vmax.f32 %v2968, 0.0
        %v3094 = vmax.f32 %v2972, 0.0
        %v3095 = vmax.f32 %v2974, 0.0
        %v3096 = vmax.f32 %v2976, 0.0
        %v3097 = vmax.f32 %v2978, 0.0
        %v3098 = vmax.f32 %v2982, 0.0
        %v3099 = vmax.f32 %v2984, 0.0
        %v3100 = vmax.f32 %v2986, 0.0
        %v3101 = vmax.f32 %v2988, 0.0
        %v3102 = vmax.f32 %v2992, 0.0
        %v3103 = vmax.f32 %v2994, 0.0
        %v3104 = vmax.f32 %v2996, 0.0
        %v3105 = vmax.f32 %v2998, 0.0
        %v3106 = vmax.f32 %v3002, 0.0
        %v3107 = vmax.f32 %v3004, 0.0
        %v3108 = vmax.f32 %v3006, 0.0
        %v3109 = vmax.f32 %v3008, 0.0
        %v3110 = vmax.f32 %v3012, 0.0
        %v3111 = vmax.f32 %v3014, 0.0
        %v3112 = vmax.f32 %v3016, 0.0
        %v3113 = vmax.f32 %v3018, 0.0
        %v3114 = vmax.f32 %v3022, 0.0
        %v3115 = vmax.f32 %v3024, 0.0
        %v3116 = vmax.f32 %v3026, 0.0
        %v3117 = vmax.f32 %v3028, 0.0
        %v3118 = vmax.f32 %v3032, 0.0
        %v3119 = vmax.f32 %v3034, 0.0
        %v3120 = vmax.f32 %v3036, 0.0
        %v3121 = vmax.f32 %v3038, 0.0
        %v3122 = vmax.f32 %v3042, 0.0
        %v3123 = vmax.f32 %v3044, 0.0
        %v3124 = vmax.f32 %v3046, 0.0
        %v3125 = vmax.f32 %v3048, 0.0
        %v3126 = vmax.f32 %v3052, 0.0
        %v3127 = vmax.f32 %v3054, 0.0
        %v3128 = vmax.f32 %v3056, 0.0
        %v3129 = vmax.f32 %v3058, 0.0
        %v3130 = vmax.f32 %v3062, 0.0
        %v3131 = vmax.f32 %v3064, 0.0
        %v3132 = vmax.f32 %v3066, 0.0
        %v3133 = vmax.f32 %v3068, 0.0
        %3134 = vst [vmem:[%s271] sm:$0xff] %v3070
        %3135 = vst [vmem:[%s271 + $0x8] sm:$0xff] %v3071
        %3136 = vst [vmem:[%s271 + $0x10] sm:$0xff] %v3072
        %3137 = vst [vmem:[%s271 + $0x18] sm:$0xff] %v3073
        %3138 = vst [vmem:[%s271 + $0x20] sm:$0xff] %v3074
        %3139 = vst [vmem:[%s271 + $0x28] sm:$0xff] %v3075
        %3140 = vst [vmem:[%s271 + $0x30] sm:$0xff] %v3076
        %3141 = vst [vmem:[%s271 + $0x38] sm:$0xff] %v3077
        %3142 = vst [vmem:[%s271 + $0x40] sm:$0xff] %v3078
        %3143 = vst [vmem:[%s271 + $0x48] sm:$0xff] %v3079
        %3144 = vst [vmem:[%s271 + $0x50] sm:$0xff] %v3080
        %3145 = vst [vmem:[%s271 + $0x58] sm:$0xff] %v3081
        %3146 = vst [vmem:[%s271 + $0x60] sm:$0xff] %v3082
        %3147 = vst [vmem:[%s271 + $0x68] sm:$0xff] %v3083
        %3148 = vst [vmem:[%s271 + $0x70] sm:$0xff] %v3084
        %3149 = vst [vmem:[%s271 + $0x78] sm:$0xff] %v3085
        %3150 = vst [vmem:[%s271 + $0x80] sm:$0xff] %v3086
        %3151 = vst [vmem:[%s271 + $0x88] sm:$0xff] %v3087
        %3152 = vst [vmem:[%s271 + $0x90] sm:$0xff] %v3088
        %3153 = vst [vmem:[%s271 + $0x98] sm:$0xff] %v3089
        %3154 = vst [vmem:[%s271 + $0xa0] sm:$0xff] %v3090
        %3155 = vst [vmem:[%s271 + $0xa8] sm:$0xff] %v3091
        %3156 = vst [vmem:[%s271 + $0xb0] sm:$0xff] %v3092
        %3157 = vst [vmem:[%s271 + $0xb8] sm:$0xff] %v3093
        %3158 = vst [vmem:[%s271 + $0xc0] sm:$0xff] %v3094
        %3159 = vst [vmem:[%s271 + $0xc8] sm:$0xff] %v3095
        %3160 = vst [vmem:[%s271 + $0xd0] sm:$0xff] %v3096
        %3161 = vst [vmem:[%s271 + $0xd8] sm:$0xff] %v3097
        %3162 = vst [vmem:[%s271 + $0xe0] sm:$0xff] %v3098
        %3163 = vst [vmem:[%s271 + $0xe8] sm:$0xff] %v3099
        %3164 = vst [vmem:[%s271 + $0xf0] sm:$0xff] %v3100
        %3165 = vst [vmem:[%s271 + $0xf8] sm:$0xff] %v3101
        %3166 = vst [vmem:[%s271 + $0x100] sm:$0xff] %v3102
        %3167 = vst [vmem:[%s271 + $0x108] sm:$0xff] %v3103
        %3168 = vst [vmem:[%s271 + $0x110] sm:$0xff] %v3104
        %3169 = vst [vmem:[%s271 + $0x118] sm:$0xff] %v3105
        %3170 = vst [vmem:[%s271 + $0x120] sm:$0xff] %v3106
        %3171 = vst [vmem:[%s271 + $0x128] sm:$0xff] %v3107
        %3172 = vst [vmem:[%s271 + $0x130] sm:$0xff] %v3108
        %3173 = vst [vmem:[%s271 + $0x138] sm:$0xff] %v3109
        %3174 = vst [vmem:[%s271 + $0x140] sm:$0xff] %v3110
        %3175 = vst [vmem:[%s271 + $0x148] sm:$0xff] %v3111
        %3176 = vst [vmem:[%s271 + $0x150] sm:$0xff] %v3112
        %3177 = vst [vmem:[%s271 + $0x158] sm:$0xff] %v3113
        %3178 = vst [vmem:[%s271 + $0x160] sm:$0xff] %v3114
        %3179 = vst [vmem:[%s271 + $0x168] sm:$0xff] %v3115
        %3180 = vst [vmem:[%s271 + $0x170] sm:$0xff] %v3116
        %3181 = vst [vmem:[%s271 + $0x178] sm:$0xff] %v3117
        %3182 = vst [vmem:[%s271 + $0x180] sm:$0xff] %v3118
        %3183 = vst [vmem:[%s271 + $0x188] sm:$0xff] %v3119
        %3184 = vst [vmem:[%s271 + $0x190] sm:$0xff] %v3120
        %3185 = vst [vmem:[%s271 + $0x198] sm:$0xff] %v3121
        %3186 = vst [vmem:[%s271 + $0x1a0] sm:$0xff] %v3122
        %3187 = vst [vmem:[%s271 + $0x1a8] sm:$0xff] %v3123
        %3188 = vst [vmem:[%s271 + $0x1b0] sm:$0xff] %v3124
        %3189 = vst [vmem:[%s271 + $0x1b8] sm:$0xff] %v3125
        %3190 = vst [vmem:[%s271 + $0x1c0] sm:$0xff] %v3126
        %3191 = vst [vmem:[%s271 + $0x1c8] sm:$0xff] %v3127
        %3192 = vst [vmem:[%s271 + $0x1d0] sm:$0xff] %v3128
        %3193 = vst [vmem:[%s271 + $0x1d8] sm:$0xff] %v3129
        %3194 = vst [vmem:[%s271 + $0x1e0] sm:$0xff] %v3130
        %3195 = vst [vmem:[%s271 + $0x1e8] sm:$0xff] %v3131
        %3196 = vst [vmem:[%s271 + $0x1f0] sm:$0xff] %v3132
        %3197 = vst [vmem:[%s271 + $0x1f8] sm:$0xff] %v3133
        %s3198 = sand.u32 %s181, 1
        %s3199 = scalar_lea.sflag [#allocation3], %s3198
        %s3200 = sand.u32 %s181, 1
        %s3201 = smul.addr %s3200, 512
        %s3202 = scalar_lea.vmem [#allocation2], %s3201
        // Predicated region
        $region49: #{bottleneck_forward.1} parent=47 // pred_check
          %p3203 = pneg %p191
        $region50: #{bottleneck_forward.1} parent=47 // pred_check_branch
          %3205 = sbr.rel (%p3203) target = $region52
        $region51: #{bottleneck_forward.1} parent=47 // pred_region
          %s3207 = ssub.s32 8192, 8192
          %3208 = vsyncadd %s3199, %s3207
          %s3209 = smul.addr %s21, 64
          %s3210 = smul.addr %s3209, 128
          %s3211 = scalar_lea.hbm %s7, %s3210
          %s3212 = sshll.u32 %s3202, 4
          %s3213 = int_to_ptr.vmem [resolvable:$true] %s3212
          %3218 = dma.vmem_to_hbm [thread:$0]  %s3213, 8192, %s3211, %s3199, 256, 256, 16
        $region52: #{bottleneck_forward.1} parent=47 // pred_fallthru
          _
      $region48: #{bottleneck_forward.1} parent=5 // pred_fallthru
        _
      %p3219 = scmp.le.s32.totalorder 2, %s16
      // Predicated region
      $region53: #{bottleneck_forward.1} parent=5 // pred_check
        %p3220 = pneg %p3219
      $region54: #{bottleneck_forward.1} parent=5 // pred_check_branch
        %3222 = sbr.rel (%p3220) target = $region56
      $region55: #{bottleneck_forward.1} parent=5 // pred_region
        %s3223 = ssub.s32 %s16, 2
        // Predicated region
        $region57: #{bottleneck_forward.1} parent=55 // pred_check
          %p3224 = pneg %p197
        $region58: #{bottleneck_forward.1} parent=55 // pred_check_branch
          %3226 = sbr.rel (%p3224) target = $region60
        $region59: #{bottleneck_forward.1} parent=55 // pred_region
          %s3227 = sand.u32 %s182, 1
          %s3228 = scalar_lea.sflag [#allocation3], %s3227
          %s3229 = sand.u32 %s182, 1
          %s3230 = smul.addr %s3229, 512
          %s3231 = scalar_lea.vmem [#allocation2], %s3230
          %3232 = dma.done %s3228, 8192
        $region60: #{bottleneck_forward.1} parent=55 // pred_fallthru
          _
      $region56: #{bottleneck_forward.1} parent=5 // pred_fallthru
        _
    $region6: #{bottleneck_forward.1} parent=1 // loop_footer
      %s20 = sadd.s32 1, %s16
    $region7: #{bottleneck_forward.1} parent=1 // loop_footer_branch
      %15 = sbr.rel target = $region3
    $region8: #{bottleneck_forward.1} parent=1 // loop_exit
      _
    %3233 = vsyncpa [#allocation3], 1
    %s3234 = scalar_lea.sflag [#allocation3], 1
    %3235 = vsyncpa %s3234, 1

</llo_original>
